<compile_context>
chip_gen: v7x
topology: tpu7x:2x2x1
jax: 0.10.0
libtpu: 0.0.40
codegen_flags: <defaults>
</compile_context>

<pallas_src>
import functools

import jax
import jax.numpy as jnp
from jax import lax
from jax.experimental import pallas as pl
from jax.experimental.pallas import tpu as pltpu


# ----------------------------------------------------------------------------
# Fused decoder kernel
# ----------------------------------------------------------------------------
def _decoder_body(x_ref, p_ref, w1_ref, b1_ref, w2_ref, b2_ref, w3_ref, b3_ref,
                  o_ref, h1_ref, *, k, tail):
    """Fused decoder body.  p_ref is the pooled-input scratch (None => no pool).

    x_ref : (1, H, W, Cin) bf16           (pool: (1, Hp, 2, Wp, 2*Cin) bf16)
    w1_ref: (k*k, Cin, Cm) bf16           b1_ref: (1, Cm) f32
    w2_ref: (k*k, Cm,  Cm) bf16           b2_ref: (1, Cm) f32
    w3_ref: (Cm, C3)       bf16           b3_ref: (1, C3) f32
    o_ref : convt -> (1, H2, 2, W2, 2*Ct) f32 ; head -> (1, H2, W2, 2) f32
    h1_ref: (H1, W1, Cm) bf16 VMEM scratch (conv1 activation, VMEM only)
    """
    if p_ref is not None:
        # 2x2 / stride-2 max pool: both pooling strides became plain indices
        # thanks to the wrapper's free reshape.
        cin = p_ref.shape[2]
        v = jnp.maximum(x_ref[0, :, 0, :, :], x_ref[0, :, 1, :, :])   # row pairs
        p_ref[...] = jnp.maximum(v[:, :, :cin], v[:, :, cin:])        # col pairs
        h_in, w_in = p_ref.shape[0], p_ref.shape[1]

        def load_x(r, j, width):
            return p_ref[r, pl.ds(j, width), :]
    else:
        h_in, w_in = x_ref.shape[1], x_ref.shape[2]

        def load_x(r, j, width):
            return x_ref[0, r, pl.ds(j, width), :]

    hh1, ww1 = h_in - k + 1, w_in - k + 1      # after conv1 (valid)
    hh2, ww2 = hh1 - k + 1, ww1 - k + 1        # after conv2 (valid)

    def conv_row(load, row, w_ref, b_ref, width):
        # One output row of a valid kxk conv: k*k shifted (width, Cin)@(Cin, Cout)
        # bf16 MXU matmuls accumulated in f32, then bias + ReLU in f32.
        acc = jnp.zeros((width, w_ref.shape[2]), jnp.float32)
        for t in range(k * k):
            i, j = t // k, t % k
            acc = acc + jnp.dot(load(row + i, j, width), w_ref[t],
                                preferred_element_type=jnp.float32)
        return jnp.maximum(acc + b_ref[...], 0.0)

    # ---- stage 1: conv1 + ReLU -> bf16 VMEM scratch --------------------------
    def stage1(row, carry):
        h1_ref[row] = conv_row(load_x, row, w1_ref, b1_ref, ww1).astype(jnp.bfloat16)
        return carry
    lax.fori_loop(0, hh1, stage1, 0)

    def load_h1(r, j, width):
        return h1_ref[r, pl.ds(j, width), :]

    # ---- stage 2 + tail: conv2 + ReLU fused with convT / 1x1+softmax ---------
    def stage2(row, carry):
        act = conv_row(load_h1, row, w2_ref, b2_ref, ww2)              # (ww2, Cm) f32
        y = jnp.dot(act.astype(jnp.bfloat16), w3_ref[...],
                    preferred_element_type=jnp.float32) + b3_ref[...]
        if tail == "convt":
            # y columns are ordered (di, dj, Ct); split by di, store the two
            # output rows 2*row and 2*row+1 in an interleave-free layout.
            half = y.shape[1] // 2                                     # 2 * Ct
            o_ref[0, row, 0] = y[:, :half].astype(o_ref.dtype)
            o_ref[0, row, 1] = y[:, half:].astype(o_ref.dtype)
        else:  # "head": stable softmax over the (2-wide) class dim, in f32
            mx = jnp.max(y, axis=-1, keepdims=True)
            e = jnp.exp(y - mx)
            o_ref[0, row] = (e / jnp.sum(e, axis=-1, keepdims=True)).astype(o_ref.dtype)
        return carry
    lax.fori_loop(0, hh2, stage2, 0)


def _decoder_kernel(x_ref, w1_ref, b1_ref, w2_ref, b2_ref, w3_ref, b3_ref,
                    o_ref, h1_ref, *, k, tail):
    _decoder_body(x_ref, None, w1_ref, b1_ref, w2_ref, b2_ref, w3_ref, b3_ref,
                  o_ref, h1_ref, k=k, tail=tail)


def _decoder_kernel_pooled(x_ref, w1_ref, b1_ref, w2_ref, b2_ref, w3_ref, b3_ref,
                           o_ref, h1_ref, p_ref, *, k, tail):
    _decoder_body(x_ref, p_ref, w1_ref, b1_ref, w2_ref, b2_ref, w3_ref, b3_ref,
                  o_ref, h1_ref, k=k, tail=tail)


# ----------------------------------------------------------------------------
# pallas_call wrapper
# ----------------------------------------------------------------------------
def _fused_decoder(x, w1, b1, w2, b2, w3, b3, *, k, tail, pool):
    """x: (N, H, W, Cin) bf16 NHWC. Returns the f32 NHWC output of the block."""
    n = x.shape[0]
    if pool:
        _, h, w, cin = x.shape
        hp, wp = h // 2, w // 2
        x_in = x.reshape(n, hp, 2, wp, 2 * cin)            # free (contiguous) reshape
        in_block = (1, hp, 2, wp, 2 * cin)
        x_map = lambda i: (i, 0, 0, 0, 0)
        h_in, w_in = hp, wp
        kernel = _decoder_kernel_pooled
    else:
        _, h_in, w_in, cin = x.shape
        x_in = x
        in_block = (1, h_in, w_in, cin)
        x_map = lambda i: (i, 0, 0, 0)
        kernel = _decoder_kernel

    hh1, ww1 = h_in - k + 1, w_in - k + 1
    hh2, ww2 = hh1 - k + 1, ww1 - k + 1
    cm = w1.shape[2]
    c3 = w3.shape[1]

    if tail == "convt":
        out_shape = jax.ShapeDtypeStruct((n, hh2, 2, ww2, c3 // 2), jnp.float32)
        out_spec = pl.BlockSpec((1, hh2, 2, ww2, c3 // 2), lambda i: (i, 0, 0, 0, 0))
    else:
        out_shape = jax.ShapeDtypeStruct((n, hh2, ww2, c3), jnp.float32)
        out_spec = pl.BlockSpec((1, hh2, ww2, c3), lambda i: (i, 0, 0, 0))

    scratch = [pltpu.VMEM((hh1, ww1, cm), jnp.bfloat16)]            # conv1 activation
    if pool:
        scratch.append(pltpu.VMEM((h_in, w_in, cin), jnp.bfloat16))  # pooled input

    out = pl.pallas_call(
        functools.partial(kernel, k=k, tail=tail),
        out_shape=out_shape,
        grid=(n,),
        in_specs=[
            pl.BlockSpec(in_block, x_map),
            pl.BlockSpec(w1.shape, lambda i: (0, 0, 0)),
            pl.BlockSpec(b1.shape, lambda i: (0, 0)),
            pl.BlockSpec(w2.shape, lambda i: (0, 0, 0)),
            pl.BlockSpec(b2.shape, lambda i: (0, 0)),
            pl.BlockSpec(w3.shape, lambda i: (0, 0)),
            pl.BlockSpec(b3.shape, lambda i: (0, 0)),
        ],
        out_specs=out_spec,
        scratch_shapes=scratch,
        compiler_params=pltpu.CompilerParams(
            # batch axis shards across TensorCores; 32 MiB scoped VMEM is above
            # the v5e default and within every generation's physical budget.
            dimension_semantics=("parallel",),
            vmem_limit_bytes=32 * 1024 * 1024),
    )(x_in, w1, b1, w2, b2, w3, b3)

    if tail == "convt":
        ct = c3 // 4
        out = out.reshape(n, 2 * hh2, 2 * ww2, ct)         # free un-interleave
    return out


def _crop_skip(x, skip):
    # NHWC version of DecoderBlock.crop_skip_layer (crop derived from the H
    # diff and applied to H and W, exactly like the reference implementation).
    size_diff = skip.shape[1] - x.shape[1]
    extra = 1 if size_diff % 2 != 0 else 0
    pad = size_diff // 2
    skip = skip[:, pad + extra: skip.shape[1] - pad,
                pad + extra: skip.shape[2] - pad, :]
    assert skip.shape == x.shape, f"{skip.shape} vs {x.shape}"
    return skip


@functools.partial(jax.jit, static_argnames=("k", "tail", "pool"))
def _forward(x, skip, w1, b1, w2, b2, w3, b3, *, k, tail, pool):
    xh = jnp.transpose(x, (0, 2, 3, 1)).astype(jnp.bfloat16)   # NCHW -> NHWC, bf16
    y = _fused_decoder(xh, w1, b1, w2, b2, w3, b3, k=k, tail=tail, pool=pool)
    if tail == "convt":
        s = jnp.transpose(skip, (0, 2, 3, 1))
        s = _crop_skip(y, s)
        y = jnp.concatenate([y, s.astype(y.dtype)], axis=-1)
    return jnp.transpose(y, (0, 3, 1, 2))                      # back to NCHW


# ----------------------------------------------------------------------------
# DecoderBlock
# ----------------------------------------------------------------------------
class DecoderBlockPallas:
    """Pallas-TPU forward pass of the PyTorch DecoderBlock (inner/middle/outer)."""

    def __init__(self, pos, chn_in, chn_out, chn_convt=None,
                 k_conv=3, k_convt=2, k_mp=2, s_mp=2, *, key):
        assert pos in ("inner", "outer", "middle")
        assert k_convt == 2 and k_mp == 2 and s_mp == 2
        self.pos = pos
        self.k = k_conv
        ks = jax.random.split(key, 8)

        def init(kk, shape, fan_in):
            bound = float(fan_in) ** -0.5
            return jax.random.uniform(kk, shape, jnp.float32, -bound, bound)

        fan1 = chn_in * k_conv * k_conv
        w1 = init(ks[0], (k_conv, k_conv, chn_in, chn_out), fan1)
        b1 = init(ks[1], (chn_out,), fan1)
        fan2 = chn_out * k_conv * k_conv
        w2 = init(ks[2], (k_conv, k_conv, chn_out, chn_out), fan2)
        b2 = init(ks[3], (chn_out,), fan2)

        # Pre-pack for the fused kernel: bf16 (k*k, Cin, Cout) taps, f32 biases.
        self.w1 = w1.reshape(k_conv * k_conv, chn_in, chn_out).astype(jnp.bfloat16)
        self.b1 = b1.reshape(1, chn_out)
        self.w2 = w2.reshape(k_conv * k_conv, chn_out, chn_out).astype(jnp.bfloat16)
        self.b2 = b2.reshape(1, chn_out)

        if pos in ("middle", "inner"):
            fant = chn_out * k_convt * k_convt
            wt = init(ks[4], (k_convt, k_convt, chn_out, chn_convt), fant)  # (di, dj, Cin, Ct)
            bt = init(ks[5], (chn_convt,), fant)
            # ConvTranspose2d(k=2, s=2) as ONE matmul: columns ordered (di, dj, Ct).
            self.w3 = (wt.transpose(2, 0, 1, 3)
                         .reshape(chn_out, 4 * chn_convt).astype(jnp.bfloat16))
            self.b3 = jnp.tile(bt, 4).reshape(1, 4 * chn_convt)
            self.tail = "convt"
        else:  # outer: 1x1 conv to 2 classes + softmax over channels
            wo = init(ks[6], (chn_out, 2), chn_out)
            bo = init(ks[7], (2,), chn_out)
            self.w3 = wo.astype(jnp.bfloat16)
            self.b3 = bo.reshape(1, 2)
            self.tail = "head"

    def __call__(self, x, skip=None):
        # x, skip: NCHW (PyTorch convention); returns NCHW float32.
        return _forward(x, skip, self.w1, self.b1, self.w2, self.b2,
                        self.w3, self.b3,
                        k=self.k, tail=self.tail, pool=(self.pos == "middle"))


# ----------------------------------------------------------------------------
if __name__ == "__main__":
    key = jax.random.PRNGKey(0)
    kx, ks1, ks2, kp1, kp2, kp3 = jax.random.split(key, 6)

    x = jax.random.normal(kx, (2, 4, 16, 16), jnp.float32)  # NCHW

    # inner: conv3->relu->conv3->relu -> convT(2, s=2) -> crop skip -> cat
    inner = DecoderBlockPallas("inner", 4, 8, chn_convt=4, key=kp1)
    skip_inner = jax.random.normal(ks1, (2, 4, 28, 28), jnp.float32)
    y_inner = inner(x, skip_inner)
    jax.block_until_ready(y_inner)
    assert y_inner.shape == (2, 8, 24, 24), y_inner.shape
    assert bool(jnp.all(jnp.isfinite(y_inner)))

    # outer: decoder -> conv1x1(->2ch) -> softmax over channels
    outer = DecoderBlockPallas("outer", 4, 8, key=kp2)
    y_outer = outer(x)
    jax.block_until_ready(y_outer)
    assert y_outer.shape == (2, 2, 12, 12), y_outer.shape
    sums = jnp.sum(y_outer, axis=1)                 # softmax over channels -> 1
    assert bool(jnp.all(jnp.abs(sums - 1.0) < 1e-3))

    # middle: maxpool2 -> decoder -> convT -> crop skip -> cat
    middle = DecoderBlockPallas("middle", 4, 8, chn_convt=4, key=kp3)
    skip_mid = jax.random.normal(ks2, (2, 4, 12, 12), jnp.float32)
    y_middle = middle(x, skip_mid)
    jax.block_until_ready(y_middle)
    assert y_middle.shape == (2, 8, 8, 8), y_middle.shape
    assert bool(jnp.all(jnp.isfinite(y_middle)))

    print("KERNEL_OK")
</pallas_src>

<mosaic_0001>
module attributes {stable_mosaic.version = 11 : i64} {
  func.func @_decoder_kernel(%arg0: i32, %arg1: memref<1x16x16x4xbf16, #tpu.memory_space<vmem>>, %arg2: memref<9x4x8xbf16, #tpu.memory_space<vmem>>, %arg3: memref<1x8xf32, #tpu.memory_space<vmem>>, %arg4: memref<9x8x8xbf16, #tpu.memory_space<vmem>>, %arg5: memref<1x8xf32, #tpu.memory_space<vmem>>, %arg6: memref<8x16xbf16, #tpu.memory_space<vmem>>, %arg7: memref<1x16xf32, #tpu.memory_space<vmem>>, %arg8: memref<1x12x2x12x8xf32, #tpu.memory_space<vmem>>, %arg9: memref<14x14x8xbf16, #tpu.memory_space<vmem>>) attributes {dimension_semantics = [#tpu.dimension_semantics<parallel>], iteration_bounds = array<i64: 2>, scalar_prefetch = 0 : i64, scratch_operands = 1 : i64, tpu.core_type = #tpu.core_type<tc>, window_params = [{transform_indices = @transform_0, window_bounds = array<i64: 1, 16, 16, 4>}, {pipeline_mode = #tpu.pipeline_mode<synchronous>, transform_indices = @transform_1, window_bounds = array<i64: 9, 4, 8>}, {pipeline_mode = #tpu.pipeline_mode<synchronous>, transform_indices = @transform_2, window_bounds = array<i64: 1, 8>}, {pipeline_mode = #tpu.pipeline_mode<synchronous>, transform_indices = @transform_3, window_bounds = array<i64: 9, 8, 8>}, {pipeline_mode = #tpu.pipeline_mode<synchronous>, transform_indices = @transform_4, window_bounds = array<i64: 1, 8>}, {pipeline_mode = #tpu.pipeline_mode<synchronous>, transform_indices = @transform_5, window_bounds = array<i64: 8, 16>}, {pipeline_mode = #tpu.pipeline_mode<synchronous>, transform_indices = @transform_6, window_bounds = array<i64: 1, 16>}, {transform_indices = @transform_7, window_bounds = array<i64: 1, 12, 2, 12, 8>}]} {
    %c0_i32 = arith.constant 0 : i32
    %c14_i32 = arith.constant 14 : i32
    %0 = arith.addi %c0_i32, %c14_i32 : i32
    %c1_i32 = arith.constant 1 : i32
    scf.for %arg10 = %c0_i32 to %0 step %c1_i32  : i32 {
      %cst = arith.constant 0.000000e+00 : f32
      %2 = vector.broadcast %cst : f32 to vector<14x8xf32>
      %c0_i32_4 = arith.constant 0 : i32
      %3 = arith.addi %arg10, %c0_i32_4 : i32
      %c0 = arith.constant 0 : index
      %4 = arith.index_cast %3 : i32 to index
      %c0_5 = arith.constant 0 : index
      %c0_6 = arith.constant 0 : index
      %5 = vector.load %arg1[%c0, %4, %c0_5, %c0_6] : memref<1x16x16x4xbf16, #tpu.memory_space<vmem>>, vector<1x1x14x4xbf16>
      %6 = vector.shape_cast %5 : vector<1x1x14x4xbf16> to vector<14x4xbf16>
      %c0_7 = arith.constant 0 : index
      %c0_8 = arith.constant 0 : index
      %c0_9 = arith.constant 0 : index
      %7 = vector.load %arg2[%c0_7, %c0_8, %c0_9] : memref<9x4x8xbf16, #tpu.memory_space<vmem>>, vector<1x4x8xbf16>
      %8 = vector.shape_cast %7 : vector<1x4x8xbf16> to vector<4x8xbf16>
      %cst_10 = arith.constant dense<0.000000e+00> : vector<14x8xf32>
      %9 = tpu.matmul %6, %8, %cst_10 {dimension_numbers = #tpu.dot_dimension_numbers<[1], [0], [0], [1], [0, 0, 1, 1], [], []>} : vector<14x4xbf16>, vector<4x8xbf16>, vector<14x8xf32> -> vector<14x8xf32>
      %10 = arith.addf %2, %9 : vector<14x8xf32>
      %c0_i32_11 = arith.constant 0 : i32
      %11 = arith.addi %arg10, %c0_i32_11 : i32
      %c0_12 = arith.constant 0 : index
      %12 = arith.index_cast %11 : i32 to index
      %c1 = arith.constant 1 : index
      %c0_13 = arith.constant 0 : index
      %13 = vector.load %arg1[%c0_12, %12, %c1, %c0_13] : memref<1x16x16x4xbf16, #tpu.memory_space<vmem>>, vector<1x1x14x4xbf16>
      %14 = vector.shape_cast %13 : vector<1x1x14x4xbf16> to vector<14x4xbf16>
      %c1_14 = arith.constant 1 : index
      %c0_15 = arith.constant 0 : index
      %c0_16 = arith.constant 0 : index
      %15 = vector.load %arg2[%c1_14, %c0_15, %c0_16] : memref<9x4x8xbf16, #tpu.memory_space<vmem>>, vector<1x4x8xbf16>
      %16 = vector.shape_cast %15 : vector<1x4x8xbf16> to vector<4x8xbf16>
      %cst_17 = arith.constant dense<0.000000e+00> : vector<14x8xf32>
      %17 = tpu.matmul %14, %16, %cst_17 {dimension_numbers = #tpu.dot_dimension_numbers<[1], [0], [0], [1], [0, 0, 1, 1], [], []>} : vector<14x4xbf16>, vector<4x8xbf16>, vector<14x8xf32> -> vector<14x8xf32>
      %18 = arith.addf %10, %17 : vector<14x8xf32>
      %c0_i32_18 = arith.constant 0 : i32
      %19 = arith.addi %arg10, %c0_i32_18 : i32
      %c0_19 = arith.constant 0 : index
      %20 = arith.index_cast %19 : i32 to index
      %c2 = arith.constant 2 : index
      %c0_20 = arith.constant 0 : index
      %21 = vector.load %arg1[%c0_19, %20, %c2, %c0_20] : memref<1x16x16x4xbf16, #tpu.memory_space<vmem>>, vector<1x1x14x4xbf16>
      %22 = vector.shape_cast %21 : vector<1x1x14x4xbf16> to vector<14x4xbf16>
      %c2_21 = arith.constant 2 : index
      %c0_22 = arith.constant 0 : index
      %c0_23 = arith.constant 0 : index
      %23 = vector.load %arg2[%c2_21, %c0_22, %c0_23] : memref<9x4x8xbf16, #tpu.memory_space<vmem>>, vector<1x4x8xbf16>
      %24 = vector.shape_cast %23 : vector<1x4x8xbf16> to vector<4x8xbf16>
      %cst_24 = arith.constant dense<0.000000e+00> : vector<14x8xf32>
      %25 = tpu.matmul %22, %24, %cst_24 {dimension_numbers = #tpu.dot_dimension_numbers<[1], [0], [0], [1], [0, 0, 1, 1], [], []>} : vector<14x4xbf16>, vector<4x8xbf16>, vector<14x8xf32> -> vector<14x8xf32>
      %26 = arith.addf %18, %25 : vector<14x8xf32>
      %c1_i32_25 = arith.constant 1 : i32
      %27 = arith.addi %arg10, %c1_i32_25 : i32
      %c0_26 = arith.constant 0 : index
      %28 = arith.index_cast %27 : i32 to index
      %c0_27 = arith.constant 0 : index
      %c0_28 = arith.constant 0 : index
      %29 = vector.load %arg1[%c0_26, %28, %c0_27, %c0_28] : memref<1x16x16x4xbf16, #tpu.memory_space<vmem>>, vector<1x1x14x4xbf16>
      %30 = vector.shape_cast %29 : vector<1x1x14x4xbf16> to vector<14x4xbf16>
      %c3 = arith.constant 3 : index
      %c0_29 = arith.constant 0 : index
      %c0_30 = arith.constant 0 : index
      %31 = vector.load %arg2[%c3, %c0_29, %c0_30] : memref<9x4x8xbf16, #tpu.memory_space<vmem>>, vector<1x4x8xbf16>
      %32 = vector.shape_cast %31 : vector<1x4x8xbf16> to vector<4x8xbf16>
      %cst_31 = arith.constant dense<0.000000e+00> : vector<14x8xf32>
      %33 = tpu.matmul %30, %32, %cst_31 {dimension_numbers = #tpu.dot_dimension_numbers<[1], [0], [0], [1], [0, 0, 1, 1], [], []>} : vector<14x4xbf16>, vector<4x8xbf16>, vector<14x8xf32> -> vector<14x8xf32>
      %34 = arith.addf %26, %33 : vector<14x8xf32>
      %c1_i32_32 = arith.constant 1 : i32
      %35 = arith.addi %arg10, %c1_i32_32 : i32
      %c0_33 = arith.constant 0 : index
      %36 = arith.index_cast %35 : i32 to index
      %c1_34 = arith.constant 1 : index
      %c0_35 = arith.constant 0 : index
      %37 = vector.load %arg1[%c0_33, %36, %c1_34, %c0_35] : memref<1x16x16x4xbf16, #tpu.memory_space<vmem>>, vector<1x1x14x4xbf16>
      %38 = vector.shape_cast %37 : vector<1x1x14x4xbf16> to vector<14x4xbf16>
      %c4 = arith.constant 4 : index
      %c0_36 = arith.constant 0 : index
      %c0_37 = arith.constant 0 : index
      %39 = vector.load %arg2[%c4, %c0_36, %c0_37] : memref<9x4x8xbf16, #tpu.memory_space<vmem>>, vector<1x4x8xbf16>
      %40 = vector.shape_cast %39 : vector<1x4x8xbf16> to vector<4x8xbf16>
      %cst_38 = arith.constant dense<0.000000e+00> : vector<14x8xf32>
      %41 = tpu.matmul %38, %40, %cst_38 {dimension_numbers = #tpu.dot_dimension_numbers<[1], [0], [0], [1], [0, 0, 1, 1], [], []>} : vector<14x4xbf16>, vector<4x8xbf16>, vector<14x8xf32> -> vector<14x8xf32>
      %42 = arith.addf %34, %41 : vector<14x8xf32>
      %c1_i32_39 = arith.constant 1 : i32
      %43 = arith.addi %arg10, %c1_i32_39 : i32
      %c0_40 = arith.constant 0 : index
      %44 = arith.index_cast %43 : i32 to index
      %c2_41 = arith.constant 2 : index
      %c0_42 = arith.constant 0 : index
      %45 = vector.load %arg1[%c0_40, %44, %c2_41, %c0_42] : memref<1x16x16x4xbf16, #tpu.memory_space<vmem>>, vector<1x1x14x4xbf16>
      %46 = vector.shape_cast %45 : vector<1x1x14x4xbf16> to vector<14x4xbf16>
      %c5 = arith.constant 5 : index
      %c0_43 = arith.constant 0 : index
      %c0_44 = arith.constant 0 : index
      %47 = vector.load %arg2[%c5, %c0_43, %c0_44] : memref<9x4x8xbf16, #tpu.memory_space<vmem>>, vector<1x4x8xbf16>
      %48 = vector.shape_cast %47 : vector<1x4x8xbf16> to vector<4x8xbf16>
      %cst_45 = arith.constant dense<0.000000e+00> : vector<14x8xf32>
      %49 = tpu.matmul %46, %48, %cst_45 {dimension_numbers = #tpu.dot_dimension_numbers<[1], [0], [0], [1], [0, 0, 1, 1], [], []>} : vector<14x4xbf16>, vector<4x8xbf16>, vector<14x8xf32> -> vector<14x8xf32>
      %50 = arith.addf %42, %49 : vector<14x8xf32>
      %c2_i32 = arith.constant 2 : i32
      %51 = arith.addi %arg10, %c2_i32 : i32
      %c0_46 = arith.constant 0 : index
      %52 = arith.index_cast %51 : i32 to index
      %c0_47 = arith.constant 0 : index
      %c0_48 = arith.constant 0 : index
      %53 = vector.load %arg1[%c0_46, %52, %c0_47, %c0_48] : memref<1x16x16x4xbf16, #tpu.memory_space<vmem>>, vector<1x1x14x4xbf16>
      %54 = vector.shape_cast %53 : vector<1x1x14x4xbf16> to vector<14x4xbf16>
      %c6 = arith.constant 6 : index
      %c0_49 = arith.constant 0 : index
      %c0_50 = arith.constant 0 : index
      %55 = vector.load %arg2[%c6, %c0_49, %c0_50] : memref<9x4x8xbf16, #tpu.memory_space<vmem>>, vector<1x4x8xbf16>
      %56 = vector.shape_cast %55 : vector<1x4x8xbf16> to vector<4x8xbf16>
      %cst_51 = arith.constant dense<0.000000e+00> : vector<14x8xf32>
      %57 = tpu.matmul %54, %56, %cst_51 {dimension_numbers = #tpu.dot_dimension_numbers<[1], [0], [0], [1], [0, 0, 1, 1], [], []>} : vector<14x4xbf16>, vector<4x8xbf16>, vector<14x8xf32> -> vector<14x8xf32>
      %58 = arith.addf %50, %57 : vector<14x8xf32>
      %c2_i32_52 = arith.constant 2 : i32
      %59 = arith.addi %arg10, %c2_i32_52 : i32
      %c0_53 = arith.constant 0 : index
      %60 = arith.index_cast %59 : i32 to index
      %c1_54 = arith.constant 1 : index
      %c0_55 = arith.constant 0 : index
      %61 = vector.load %arg1[%c0_53, %60, %c1_54, %c0_55] : memref<1x16x16x4xbf16, #tpu.memory_space<vmem>>, vector<1x1x14x4xbf16>
      %62 = vector.shape_cast %61 : vector<1x1x14x4xbf16> to vector<14x4xbf16>
      %c7 = arith.constant 7 : index
      %c0_56 = arith.constant 0 : index
      %c0_57 = arith.constant 0 : index
      %63 = vector.load %arg2[%c7, %c0_56, %c0_57] : memref<9x4x8xbf16, #tpu.memory_space<vmem>>, vector<1x4x8xbf16>
      %64 = vector.shape_cast %63 : vector<1x4x8xbf16> to vector<4x8xbf16>
      %cst_58 = arith.constant dense<0.000000e+00> : vector<14x8xf32>
      %65 = tpu.matmul %62, %64, %cst_58 {dimension_numbers = #tpu.dot_dimension_numbers<[1], [0], [0], [1], [0, 0, 1, 1], [], []>} : vector<14x4xbf16>, vector<4x8xbf16>, vector<14x8xf32> -> vector<14x8xf32>
      %66 = arith.addf %58, %65 : vector<14x8xf32>
      %c2_i32_59 = arith.constant 2 : i32
      %67 = arith.addi %arg10, %c2_i32_59 : i32
      %c0_60 = arith.constant 0 : index
      %68 = arith.index_cast %67 : i32 to index
      %c2_61 = arith.constant 2 : index
      %c0_62 = arith.constant 0 : index
      %69 = vector.load %arg1[%c0_60, %68, %c2_61, %c0_62] : memref<1x16x16x4xbf16, #tpu.memory_space<vmem>>, vector<1x1x14x4xbf16>
      %70 = vector.shape_cast %69 : vector<1x1x14x4xbf16> to vector<14x4xbf16>
      %c8 = arith.constant 8 : index
      %c0_63 = arith.constant 0 : index
      %c0_64 = arith.constant 0 : index
      %71 = vector.load %arg2[%c8, %c0_63, %c0_64] : memref<9x4x8xbf16, #tpu.memory_space<vmem>>, vector<1x4x8xbf16>
      %72 = vector.shape_cast %71 : vector<1x4x8xbf16> to vector<4x8xbf16>
      %cst_65 = arith.constant dense<0.000000e+00> : vector<14x8xf32>
      %73 = tpu.matmul %70, %72, %cst_65 {dimension_numbers = #tpu.dot_dimension_numbers<[1], [0], [0], [1], [0, 0, 1, 1], [], []>} : vector<14x4xbf16>, vector<4x8xbf16>, vector<14x8xf32> -> vector<14x8xf32>
      %74 = arith.addf %66, %73 : vector<14x8xf32>
      %c0_66 = arith.constant 0 : index
      %c0_67 = arith.constant 0 : index
      %75 = vector.load %arg3[%c0_66, %c0_67] : memref<1x8xf32, #tpu.memory_space<vmem>>, vector<1x8xf32>
      %76 = vector.broadcast %75 : vector<1x8xf32> to vector<14x8xf32>
      %77 = arith.addf %74, %76 : vector<14x8xf32>
      %cst_68 = arith.constant 0.000000e+00 : f32
      %78 = vector.broadcast %cst_68 : f32 to vector<14x8xf32>
      %79 = arith.maximumf %77, %78 : vector<14x8xf32>
      %80 = arith.truncf %79 : vector<14x8xf32> to vector<14x8xbf16>
      %81 = arith.index_cast %arg10 : i32 to index
      %c0_69 = arith.constant 0 : index
      %c0_70 = arith.constant 0 : index
      %82 = vector.load %arg9[%81, %c0_69, %c0_70] : memref<14x14x8xbf16, #tpu.memory_space<vmem>>, vector<1x14x8xbf16>
      %83 = vector.shape_cast %82 : vector<1x14x8xbf16> to vector<14x8xbf16>
      %84 = vector.shape_cast %80 : vector<14x8xbf16> to vector<1x14x8xbf16>
      tpu.vector_store %arg9[%81, %c0_69, %c0_70], %84 {strides = array<i32>} : memref<14x14x8xbf16, #tpu.memory_space<vmem>>, vector<1x14x8xbf16>,
    }
    %c14_i32_0 = arith.constant 14 : i32
    %c0_i32_1 = arith.constant 0 : i32
    %c12_i32 = arith.constant 12 : i32
    %1 = arith.addi %c0_i32_1, %c12_i32 : i32
    %c1_i32_2 = arith.constant 1 : i32
    scf.for %arg10 = %c0_i32_1 to %1 step %c1_i32_2  : i32 {
      %cst = arith.constant 0.000000e+00 : f32
      %2 = vector.broadcast %cst : f32 to vector<12x8xf32>
      %c0_i32_4 = arith.constant 0 : i32
      %3 = arith.addi %arg10, %c0_i32_4 : i32
      %4 = arith.index_cast %3 : i32 to index
      %c0 = arith.constant 0 : index
      %c0_5 = arith.constant 0 : index
      %5 = vector.load %arg9[%4, %c0, %c0_5] : memref<14x14x8xbf16, #tpu.memory_space<vmem>>, vector<1x12x8xbf16>
      %6 = vector.shape_cast %5 : vector<1x12x8xbf16> to vector<12x8xbf16>
      %c0_6 = arith.constant 0 : index
      %c0_7 = arith.constant 0 : index
      %c0_8 = arith.constant 0 : index
      %7 = vector.load %arg4[%c0_6, %c0_7, %c0_8] : memref<9x8x8xbf16, #tpu.memory_space<vmem>>, vector<1x8x8xbf16>
      %8 = vector.shape_cast %7 : vector<1x8x8xbf16> to vector<8x8xbf16>
      %cst_9 = arith.constant dense<0.000000e+00> : vector<12x8xf32>
      %9 = tpu.matmul %6, %8, %cst_9 {dimension_numbers = #tpu.dot_dimension_numbers<[1], [0], [0], [1], [0, 0, 1, 1], [], []>} : vector<12x8xbf16>, vector<8x8xbf16>, vector<12x8xf32> -> vector<12x8xf32>
      %10 = arith.addf %2, %9 : vector<12x8xf32>
      %c0_i32_10 = arith.constant 0 : i32
      %11 = arith.addi %arg10, %c0_i32_10 : i32
      %12 = arith.index_cast %11 : i32 to index
      %c1 = arith.constant 1 : index
      %c0_11 = arith.constant 0 : index
      %13 = vector.load %arg9[%12, %c1, %c0_11] : memref<14x14x8xbf16, #tpu.memory_space<vmem>>, vector<1x12x8xbf16>
      %14 = vector.shape_cast %13 : vector<1x12x8xbf16> to vector<12x8xbf16>
      %c1_12 = arith.constant 1 : index
      %c0_13 = arith.constant 0 : index
      %c0_14 = arith.constant 0 : index
      %15 = vector.load %arg4[%c1_12, %c0_13, %c0_14] : memref<9x8x8xbf16, #tpu.memory_space<vmem>>, vector<1x8x8xbf16>
      %16 = vector.shape_cast %15 : vector<1x8x8xbf16> to vector<8x8xbf16>
      %cst_15 = arith.constant dense<0.000000e+00> : vector<12x8xf32>
      %17 = tpu.matmul %14, %16, %cst_15 {dimension_numbers = #tpu.dot_dimension_numbers<[1], [0], [0], [1], [0, 0, 1, 1], [], []>} : vector<12x8xbf16>, vector<8x8xbf16>, vector<12x8xf32> -> vector<12x8xf32>
      %18 = arith.addf %10, %17 : vector<12x8xf32>
      %c0_i32_16 = arith.constant 0 : i32
      %19 = arith.addi %arg10, %c0_i32_16 : i32
      %20 = arith.index_cast %19 : i32 to index
      %c2 = arith.constant 2 : index
      %c0_17 = arith.constant 0 : index
      %21 = vector.load %arg9[%20, %c2, %c0_17] : memref<14x14x8xbf16, #tpu.memory_space<vmem>>, vector<1x12x8xbf16>
      %22 = vector.shape_cast %21 : vector<1x12x8xbf16> to vector<12x8xbf16>
      %c2_18 = arith.constant 2 : index
      %c0_19 = arith.constant 0 : index
      %c0_20 = arith.constant 0 : index
      %23 = vector.load %arg4[%c2_18, %c0_19, %c0_20] : memref<9x8x8xbf16, #tpu.memory_space<vmem>>, vector<1x8x8xbf16>
      %24 = vector.shape_cast %23 : vector<1x8x8xbf16> to vector<8x8xbf16>
      %cst_21 = arith.constant dense<0.000000e+00> : vector<12x8xf32>
      %25 = tpu.matmul %22, %24, %cst_21 {dimension_numbers = #tpu.dot_dimension_numbers<[1], [0], [0], [1], [0, 0, 1, 1], [], []>} : vector<12x8xbf16>, vector<8x8xbf16>, vector<12x8xf32> -> vector<12x8xf32>
      %26 = arith.addf %18, %25 : vector<12x8xf32>
      %c1_i32_22 = arith.constant 1 : i32
      %27 = arith.addi %arg10, %c1_i32_22 : i32
      %28 = arith.index_cast %27 : i32 to index
      %c0_23 = arith.constant 0 : index
      %c0_24 = arith.constant 0 : index
      %29 = vector.load %arg9[%28, %c0_23, %c0_24] : memref<14x14x8xbf16, #tpu.memory_space<vmem>>, vector<1x12x8xbf16>
      %30 = vector.shape_cast %29 : vector<1x12x8xbf16> to vector<12x8xbf16>
      %c3 = arith.constant 3 : index
      %c0_25 = arith.constant 0 : index
      %c0_26 = arith.constant 0 : index
      %31 = vector.load %arg4[%c3, %c0_25, %c0_26] : memref<9x8x8xbf16, #tpu.memory_space<vmem>>, vector<1x8x8xbf16>
      %32 = vector.shape_cast %31 : vector<1x8x8xbf16> to vector<8x8xbf16>
      %cst_27 = arith.constant dense<0.000000e+00> : vector<12x8xf32>
      %33 = tpu.matmul %30, %32, %cst_27 {dimension_numbers = #tpu.dot_dimension_numbers<[1], [0], [0], [1], [0, 0, 1, 1], [], []>} : vector<12x8xbf16>, vector<8x8xbf16>, vector<12x8xf32> -> vector<12x8xf32>
      %34 = arith.addf %26, %33 : vector<12x8xf32>
      %c1_i32_28 = arith.constant 1 : i32
      %35 = arith.addi %arg10, %c1_i32_28 : i32
      %36 = arith.index_cast %35 : i32 to index
      %c1_29 = arith.constant 1 : index
      %c0_30 = arith.constant 0 : index
      %37 = vector.load %arg9[%36, %c1_29, %c0_30] : memref<14x14x8xbf16, #tpu.memory_space<vmem>>, vector<1x12x8xbf16>
      %38 = vector.shape_cast %37 : vector<1x12x8xbf16> to vector<12x8xbf16>
      %c4 = arith.constant 4 : index
      %c0_31 = arith.constant 0 : index
      %c0_32 = arith.constant 0 : index
      %39 = vector.load %arg4[%c4, %c0_31, %c0_32] : memref<9x8x8xbf16, #tpu.memory_space<vmem>>, vector<1x8x8xbf16>
      %40 = vector.shape_cast %39 : vector<1x8x8xbf16> to vector<8x8xbf16>
      %cst_33 = arith.constant dense<0.000000e+00> : vector<12x8xf32>
      %41 = tpu.matmul %38, %40, %cst_33 {dimension_numbers = #tpu.dot_dimension_numbers<[1], [0], [0], [1], [0, 0, 1, 1], [], []>} : vector<12x8xbf16>, vector<8x8xbf16>, vector<12x8xf32> -> vector<12x8xf32>
      %42 = arith.addf %34, %41 : vector<12x8xf32>
      %c1_i32_34 = arith.constant 1 : i32
      %43 = arith.addi %arg10, %c1_i32_34 : i32
      %44 = arith.index_cast %43 : i32 to index
      %c2_35 = arith.constant 2 : index
      %c0_36 = arith.constant 0 : index
      %45 = vector.load %arg9[%44, %c2_35, %c0_36] : memref<14x14x8xbf16, #tpu.memory_space<vmem>>, vector<1x12x8xbf16>
      %46 = vector.shape_cast %45 : vector<1x12x8xbf16> to vector<12x8xbf16>
      %c5 = arith.constant 5 : index
      %c0_37 = arith.constant 0 : index
      %c0_38 = arith.constant 0 : index
      %47 = vector.load %arg4[%c5, %c0_37, %c0_38] : memref<9x8x8xbf16, #tpu.memory_space<vmem>>, vector<1x8x8xbf16>
      %48 = vector.shape_cast %47 : vector<1x8x8xbf16> to vector<8x8xbf16>
      %cst_39 = arith.constant dense<0.000000e+00> : vector<12x8xf32>
      %49 = tpu.matmul %46, %48, %cst_39 {dimension_numbers = #tpu.dot_dimension_numbers<[1], [0], [0], [1], [0, 0, 1, 1], [], []>} : vector<12x8xbf16>, vector<8x8xbf16>, vector<12x8xf32> -> vector<12x8xf32>
      %50 = arith.addf %42, %49 : vector<12x8xf32>
      %c2_i32 = arith.constant 2 : i32
      %51 = arith.addi %arg10, %c2_i32 : i32
      %52 = arith.index_cast %51 : i32 to index
      %c0_40 = arith.constant 0 : index
      %c0_41 = arith.constant 0 : index
      %53 = vector.load %arg9[%52, %c0_40, %c0_41] : memref<14x14x8xbf16, #tpu.memory_space<vmem>>, vector<1x12x8xbf16>
      %54 = vector.shape_cast %53 : vector<1x12x8xbf16> to vector<12x8xbf16>
      %c6 = arith.constant 6 : index
      %c0_42 = arith.constant 0 : index
      %c0_43 = arith.constant 0 : index
      %55 = vector.load %arg4[%c6, %c0_42, %c0_43] : memref<9x8x8xbf16, #tpu.memory_space<vmem>>, vector<1x8x8xbf16>
      %56 = vector.shape_cast %55 : vector<1x8x8xbf16> to vector<8x8xbf16>
      %cst_44 = arith.constant dense<0.000000e+00> : vector<12x8xf32>
      %57 = tpu.matmul %54, %56, %cst_44 {dimension_numbers = #tpu.dot_dimension_numbers<[1], [0], [0], [1], [0, 0, 1, 1], [], []>} : vector<12x8xbf16>, vector<8x8xbf16>, vector<12x8xf32> -> vector<12x8xf32>
      %58 = arith.addf %50, %57 : vector<12x8xf32>
      %c2_i32_45 = arith.constant 2 : i32
      %59 = arith.addi %arg10, %c2_i32_45 : i32
      %60 = arith.index_cast %59 : i32 to index
      %c1_46 = arith.constant 1 : index
      %c0_47 = arith.constant 0 : index
      %61 = vector.load %arg9[%60, %c1_46, %c0_47] : memref<14x14x8xbf16, #tpu.memory_space<vmem>>, vector<1x12x8xbf16>
      %62 = vector.shape_cast %61 : vector<1x12x8xbf16> to vector<12x8xbf16>
      %c7 = arith.constant 7 : index
      %c0_48 = arith.constant 0 : index
      %c0_49 = arith.constant 0 : index
      %63 = vector.load %arg4[%c7, %c0_48, %c0_49] : memref<9x8x8xbf16, #tpu.memory_space<vmem>>, vector<1x8x8xbf16>
      %64 = vector.shape_cast %63 : vector<1x8x8xbf16> to vector<8x8xbf16>
      %cst_50 = arith.constant dense<0.000000e+00> : vector<12x8xf32>
      %65 = tpu.matmul %62, %64, %cst_50 {dimension_numbers = #tpu.dot_dimension_numbers<[1], [0], [0], [1], [0, 0, 1, 1], [], []>} : vector<12x8xbf16>, vector<8x8xbf16>, vector<12x8xf32> -> vector<12x8xf32>
      %66 = arith.addf %58, %65 : vector<12x8xf32>
      %c2_i32_51 = arith.constant 2 : i32
      %67 = arith.addi %arg10, %c2_i32_51 : i32
      %68 = arith.index_cast %67 : i32 to index
      %c2_52 = arith.constant 2 : index
      %c0_53 = arith.constant 0 : index
      %69 = vector.load %arg9[%68, %c2_52, %c0_53] : memref<14x14x8xbf16, #tpu.memory_space<vmem>>, vector<1x12x8xbf16>
      %70 = vector.shape_cast %69 : vector<1x12x8xbf16> to vector<12x8xbf16>
      %c8 = arith.constant 8 : index
      %c0_54 = arith.constant 0 : index
      %c0_55 = arith.constant 0 : index
      %71 = vector.load %arg4[%c8, %c0_54, %c0_55] : memref<9x8x8xbf16, #tpu.memory_space<vmem>>, vector<1x8x8xbf16>
      %72 = vector.shape_cast %71 : vector<1x8x8xbf16> to vector<8x8xbf16>
      %cst_56 = arith.constant dense<0.000000e+00> : vector<12x8xf32>
      %73 = tpu.matmul %70, %72, %cst_56 {dimension_numbers = #tpu.dot_dimension_numbers<[1], [0], [0], [1], [0, 0, 1, 1], [], []>} : vector<12x8xbf16>, vector<8x8xbf16>, vector<12x8xf32> -> vector<12x8xf32>
      %74 = arith.addf %66, %73 : vector<12x8xf32>
      %c0_57 = arith.constant 0 : index
      %c0_58 = arith.constant 0 : index
      %75 = vector.load %arg5[%c0_57, %c0_58] : memref<1x8xf32, #tpu.memory_space<vmem>>, vector<1x8xf32>
      %76 = vector.broadcast %75 : vector<1x8xf32> to vector<12x8xf32>
      %77 = arith.addf %74, %76 : vector<12x8xf32>
      %cst_59 = arith.constant 0.000000e+00 : f32
      %78 = vector.broadcast %cst_59 : f32 to vector<12x8xf32>
      %79 = arith.maximumf %77, %78 : vector<12x8xf32>
      %80 = arith.truncf %79 : vector<12x8xf32> to vector<12x8xbf16>
      %c0_60 = arith.constant 0 : index
      %c0_61 = arith.constant 0 : index
      %81 = vector.load %arg6[%c0_60, %c0_61] : memref<8x16xbf16, #tpu.memory_space<vmem>>, vector<8x16xbf16>
      %cst_62 = arith.constant dense<0.000000e+00> : vector<12x16xf32>
      %82 = tpu.matmul %80, %81, %cst_62 {dimension_numbers = #tpu.dot_dimension_numbers<[1], [0], [0], [1], [0, 0, 1, 1], [], []>} : vector<12x8xbf16>, vector<8x16xbf16>, vector<12x16xf32> -> vector<12x16xf32>
      %c0_63 = arith.constant 0 : index
      %c0_64 = arith.constant 0 : index
      %83 = vector.load %arg7[%c0_63, %c0_64] : memref<1x16xf32, #tpu.memory_space<vmem>>, vector<1x16xf32>
      %84 = vector.broadcast %83 : vector<1x16xf32> to vector<12x16xf32>
      %85 = arith.addf %82, %84 : vector<12x16xf32>
      %86 = vector.extract_strided_slice %85 {offsets = [0, 0], sizes = [12, 8], strides = [1, 1]} : vector<12x16xf32> to vector<12x8xf32>
      %c0_65 = arith.constant 0 : index
      %87 = arith.index_cast %arg10 : i32 to index
      %c0_66 = arith.constant 0 : index
      %c0_67 = arith.constant 0 : index
      %c0_68 = arith.constant 0 : index
      %88 = vector.load %arg8[%c0_65, %87, %c0_66, %c0_67, %c0_68] : memref<1x12x2x12x8xf32, #tpu.memory_space<vmem>>, vector<1x1x1x12x8xf32>
      %89 = vector.shape_cast %88 : vector<1x1x1x12x8xf32> to vector<12x8xf32>
      %90 = vector.shape_cast %86 : vector<12x8xf32> to vector<1x1x1x12x8xf32>
      tpu.vector_store %arg8[%c0_65, %87, %c0_66, %c0_67, %c0_68], %90 {strides = array<i32>} : memref<1x12x2x12x8xf32, #tpu.memory_space<vmem>>, vector<1x1x1x12x8xf32>,
      %91 = vector.extract_strided_slice %85 {offsets = [0, 8], sizes = [12, 8], strides = [1, 1]} : vector<12x16xf32> to vector<12x8xf32>
      %c0_69 = arith.constant 0 : index
      %92 = arith.index_cast %arg10 : i32 to index
      %c1_70 = arith.constant 1 : index
      %c0_71 = arith.constant 0 : index
      %c0_72 = arith.constant 0 : index
      %93 = vector.load %arg8[%c0_69, %92, %c1_70, %c0_71, %c0_72] : memref<1x12x2x12x8xf32, #tpu.memory_space<vmem>>, vector<1x1x1x12x8xf32>
      %94 = vector.shape_cast %93 : vector<1x1x1x12x8xf32> to vector<12x8xf32>
      %95 = vector.shape_cast %91 : vector<12x8xf32> to vector<1x1x1x12x8xf32>
      tpu.vector_store %arg8[%c0_69, %92, %c1_70, %c0_71, %c0_72], %95 {strides = array<i32>} : memref<1x12x2x12x8xf32, #tpu.memory_space<vmem>>, vector<1x1x1x12x8xf32>,
    }
    %c12_i32_3 = arith.constant 12 : i32
    return
  }
  func.func @transform_0(%arg0: i32) -> (i32, i32, i32, i32) {
    %c0_i32 = arith.constant 0 : i32
    %c0_i32_0 = arith.constant 0 : i32
    %c0_i32_1 = arith.constant 0 : i32
    %c0_i32_2 = arith.constant 0 : i32
    return %arg0, %c0_i32, %c0_i32_0, %c0_i32_1 : i32, i32, i32, i32
  }
  func.func @transform_1(%arg0: i32) -> (i32, i32, i32) {
    %c0_i32 = arith.constant 0 : i32
    %c0_i32_0 = arith.constant 0 : i32
    %c0_i32_1 = arith.constant 0 : i32
    %c0_i32_2 = arith.constant 0 : i32
    return %c0_i32, %c0_i32_0, %c0_i32_1 : i32, i32, i32
  }
  func.func @transform_2(%arg0: i32) -> (i32, i32) {
    %c0_i32 = arith.constant 0 : i32
    %c0_i32_0 = arith.constant 0 : i32
    %c0_i32_1 = arith.constant 0 : i32
    return %c0_i32, %c0_i32_0 : i32, i32
  }
  func.func @transform_3(%arg0: i32) -> (i32, i32, i32) {
    %c0_i32 = arith.constant 0 : i32
    %c0_i32_0 = arith.constant 0 : i32
    %c0_i32_1 = arith.constant 0 : i32
    %c0_i32_2 = arith.constant 0 : i32
    return %c0_i32, %c0_i32_0, %c0_i32_1 : i32, i32, i32
  }
  func.func @transform_4(%arg0: i32) -> (i32, i32) {
    %c0_i32 = arith.constant 0 : i32
    %c0_i32_0 = arith.constant 0 : i32
    %c0_i32_1 = arith.constant 0 : i32
    return %c0_i32, %c0_i32_0 : i32, i32
  }
  func.func @transform_5(%arg0: i32) -> (i32, i32) {
    %c0_i32 = arith.constant 0 : i32
    %c0_i32_0 = arith.constant 0 : i32
    %c0_i32_1 = arith.constant 0 : i32
    return %c0_i32, %c0_i32_0 : i32, i32
  }
  func.func @transform_6(%arg0: i32) -> (i32, i32) {
    %c0_i32 = arith.constant 0 : i32
    %c0_i32_0 = arith.constant 0 : i32
    %c0_i32_1 = arith.constant 0 : i32
    return %c0_i32, %c0_i32_0 : i32, i32
  }
  func.func @transform_7(%arg0: i32) -> (i32, i32, i32, i32, i32) {
    %c0_i32 = arith.constant 0 : i32
    %c0_i32_0 = arith.constant 0 : i32
    %c0_i32_1 = arith.constant 0 : i32
    %c0_i32_2 = arith.constant 0 : i32
    %c0_i32_3 = arith.constant 0 : i32
    return %arg0, %c0_i32, %c0_i32_0, %c0_i32_1, %c0_i32_2 : i32, i32, i32, i32, i32
  }
}

</mosaic_0001>

<llo_original>
// kernel: _forward.1
$region0: #{_forward.1}
  #allocation0 [shape = 'u32[]', space=smem, size = 0x4, offset = 0x4, fixed_abs, tag = 'smem constant byte address 0x4 - core index']
  #allocation1 [shape = 'u32[144,128]{1,0:T(1,128)}', space=vmem, size = 0x12000, scoped, tag = 'internal scratch']
  #allocation2 [shape = 'bf16[14,14,8]{2,1,0:T(8,128)(2,1)}', space=vmem, size = 0xe000, scoped, tag = 'scratch operand']
  %s0 = inlined_call_operand.vmem [shape: bf16[2,16,16,4], index: 0, kind: input, shape index: {}]
  %s1 = inlined_call_operand.vmem [shape: bf16[9,4,8], index: 1, kind: input, shape index: {}]
  %s2 = inlined_call_operand.vmem [shape: f32[1,8], index: 2, kind: input, shape index: {}]
  %s3 = inlined_call_operand.vmem [shape: bf16[9,8,8], index: 3, kind: input, shape index: {}]
  %s4 = inlined_call_operand.vmem [shape: f32[1,8], index: 4, kind: input, shape index: {}]
  %s5 = inlined_call_operand.vmem [shape: bf16[8,16], index: 5, kind: input, shape index: {}]
  %s6 = inlined_call_operand.vmem [shape: f32[1,16], index: 6, kind: input, shape index: {}]
  %s7 = inlined_call_operand.vmem [shape: f32[2,12,2,12,8], index: 7, kind: output, shape index: {}]
  %s8 = sld [smem:[#allocation0]]
  $region75: #{_forward.1} parent=0
    _
  %s10 = ssub.s32 1, %s8
  %s11 = scalar_select 0, %s10, %s8
  loop: start=0, step=1, limit=4
  $region2: #{_forward.1} parent=0 // loop_pre_header
    _
  $region3: #{_forward.1} parent=0 // loop_header
    %s13 = sphi 0, %s17
    %p14 = scmp.ge.s32.totalorder %s13, 4
    %s23 = sphi 0, %s25
    %s26 = sphi 0, %s23
    %s27 = sphi 0, %s26
    %s43 = sphi 0, %s27
    %s47 = sphi 0, %s47
    %s49 = sphi 0, %s47
    %s50 = sphi 0, %s49
    %s64 = sphi 0, %s50
    %s68 = sphi 0, %s68
    %s70 = sphi 0, %s68
    %s71 = sphi 0, %s70
    %s85 = sphi 0, %s71
    %s89 = sphi 0, %s89
    %s91 = sphi 0, %s89
    %s92 = sphi 0, %s91
    %s106 = sphi 0, %s92
    %s110 = sphi 0, %s110
    %s112 = sphi 0, %s110
    %s113 = sphi 0, %s112
    %s127 = sphi 0, %s113
    %s131 = sphi 0, %s131
    %s133 = sphi 0, %s131
    %s134 = sphi 0, %s133
    %s148 = sphi 0, %s134
    %s152 = sphi 0, %s152
    %s154 = sphi 0, %s152
    %s155 = sphi 0, %s154
    %s169 = sphi 0, %s155
    %s175 = sphi 0, %s177
    %s178 = sphi 0, %s175
    %s179 = sphi 0, %s178
    %s195 = sphi 0, %s179
  $region4: #{_forward.1} parent=0 // loop_header_branch
    %16 = sbr.rel (%p14) target = $region8
  $region5: #{_forward.1} parent=0 // loop_body
    %s18 = ssub.s32 %s13, 1
    %s19 = ssub.s32 %s13, 2
    %s20 = sadd.s32 %s13, 1
    %s21 = ssub.s32 %s13, %s20
    %p22 = scmp.eq.s32.totalorder %s21, 0
    %s24 = sadd.s32 %s23, 1
    %s25 = scalar_select %p22, %s23, %s24
    %p28 = pneg %p22
    %p29 = scmp.eq.s32.totalorder %s13, 1
    %p30 = por %p28, %p29
    %p31 = scmp.ne.s32.totalorder %s23, %s26
    %p32 = scmp.eq.s32.totalorder %s13, 0
    %p33 = por %p31, %p32
    %p34 = scmp.ne.s32.totalorder %s23, %s26
    %p35 = scmp.eq.s32.totalorder %s18, 1
    %p36 = por %p34, %p35
    %p37 = scmp.ne.s32.totalorder %s26, %s27
    %p38 = scmp.eq.s32.totalorder %s18, 0
    %p39 = por %p37, %p38
    %p40 = scmp.ne.s32.totalorder %s26, %s27
    %p41 = scmp.eq.s32.totalorder %s19, 1
    %p42 = por %p40, %p41
    %p44 = scmp.ne.s32.totalorder %s27, %s43
    %p45 = scmp.eq.s32.totalorder %s19, 0
    %p46 = por %p44, %p45
    %s48 = sadd.s32 %s47, 1
    %p51 = scmp.eq.s32.totalorder %s13, 1
    %p52 = scmp.ne.s32.totalorder %s47, %s49
    %p53 = scmp.eq.s32.totalorder %s13, 0
    %p54 = por %p52, %p53
    %p55 = scmp.ne.s32.totalorder %s47, %s49
    %p56 = scmp.eq.s32.totalorder %s18, 1
    %p57 = por %p55, %p56
    %p58 = scmp.ne.s32.totalorder %s49, %s50
    %p59 = scmp.eq.s32.totalorder %s18, 0
    %p60 = por %p58, %p59
    %p61 = scmp.ne.s32.totalorder %s49, %s50
    %p62 = scmp.eq.s32.totalorder %s19, 1
    %p63 = por %p61, %p62
    %p65 = scmp.ne.s32.totalorder %s50, %s64
    %p66 = scmp.eq.s32.totalorder %s19, 0
    %p67 = por %p65, %p66
    %s69 = sadd.s32 %s68, 1
    %p72 = scmp.eq.s32.totalorder %s13, 1
    %p73 = scmp.ne.s32.totalorder %s68, %s70
    %p74 = scmp.eq.s32.totalorder %s13, 0
    %p75 = por %p73, %p74
    %p76 = scmp.ne.s32.totalorder %s68, %s70
    %p77 = scmp.eq.s32.totalorder %s18, 1
    %p78 = por %p76, %p77
    %p79 = scmp.ne.s32.totalorder %s70, %s71
    %p80 = scmp.eq.s32.totalorder %s18, 0
    %p81 = por %p79, %p80
    %p82 = scmp.ne.s32.totalorder %s70, %s71
    %p83 = scmp.eq.s32.totalorder %s19, 1
    %p84 = por %p82, %p83
    %p86 = scmp.ne.s32.totalorder %s71, %s85
    %p87 = scmp.eq.s32.totalorder %s19, 0
    %p88 = por %p86, %p87
    %s90 = sadd.s32 %s89, 1
    %p93 = scmp.eq.s32.totalorder %s13, 1
    %p94 = scmp.ne.s32.totalorder %s89, %s91
    %p95 = scmp.eq.s32.totalorder %s13, 0
    %p96 = por %p94, %p95
    %p97 = scmp.ne.s32.totalorder %s89, %s91
    %p98 = scmp.eq.s32.totalorder %s18, 1
    %p99 = por %p97, %p98
    %p100 = scmp.ne.s32.totalorder %s91, %s92
    %p101 = scmp.eq.s32.totalorder %s18, 0
    %p102 = por %p100, %p101
    %p103 = scmp.ne.s32.totalorder %s91, %s92
    %p104 = scmp.eq.s32.totalorder %s19, 1
    %p105 = por %p103, %p104
    %p107 = scmp.ne.s32.totalorder %s92, %s106
    %p108 = scmp.eq.s32.totalorder %s19, 0
    %p109 = por %p107, %p108
    %s111 = sadd.s32 %s110, 1
    %p114 = scmp.eq.s32.totalorder %s13, 1
    %p115 = scmp.ne.s32.totalorder %s110, %s112
    %p116 = scmp.eq.s32.totalorder %s13, 0
    %p117 = por %p115, %p116
    %p118 = scmp.ne.s32.totalorder %s110, %s112
    %p119 = scmp.eq.s32.totalorder %s18, 1
    %p120 = por %p118, %p119
    %p121 = scmp.ne.s32.totalorder %s112, %s113
    %p122 = scmp.eq.s32.totalorder %s18, 0
    %p123 = por %p121, %p122
    %p124 = scmp.ne.s32.totalorder %s112, %s113
    %p125 = scmp.eq.s32.totalorder %s19, 1
    %p126 = por %p124, %p125
    %p128 = scmp.ne.s32.totalorder %s113, %s127
    %p129 = scmp.eq.s32.totalorder %s19, 0
    %p130 = por %p128, %p129
    %s132 = sadd.s32 %s131, 1
    %p135 = scmp.eq.s32.totalorder %s13, 1
    %p136 = scmp.ne.s32.totalorder %s131, %s133
    %p137 = scmp.eq.s32.totalorder %s13, 0
    %p138 = por %p136, %p137
    %p139 = scmp.ne.s32.totalorder %s131, %s133
    %p140 = scmp.eq.s32.totalorder %s18, 1
    %p141 = por %p139, %p140
    %p142 = scmp.ne.s32.totalorder %s133, %s134
    %p143 = scmp.eq.s32.totalorder %s18, 0
    %p144 = por %p142, %p143
    %p145 = scmp.ne.s32.totalorder %s133, %s134
    %p146 = scmp.eq.s32.totalorder %s19, 1
    %p147 = por %p145, %p146
    %p149 = scmp.ne.s32.totalorder %s134, %s148
    %p150 = scmp.eq.s32.totalorder %s19, 0
    %p151 = por %p149, %p150
    %s153 = sadd.s32 %s152, 1
    %p156 = scmp.eq.s32.totalorder %s13, 1
    %p157 = scmp.ne.s32.totalorder %s152, %s154
    %p158 = scmp.eq.s32.totalorder %s13, 0
    %p159 = por %p157, %p158
    %p160 = scmp.ne.s32.totalorder %s152, %s154
    %p161 = scmp.eq.s32.totalorder %s18, 1
    %p162 = por %p160, %p161
    %p163 = scmp.ne.s32.totalorder %s154, %s155
    %p164 = scmp.eq.s32.totalorder %s18, 0
    %p165 = por %p163, %p164
    %p166 = scmp.ne.s32.totalorder %s154, %s155
    %p167 = scmp.eq.s32.totalorder %s19, 1
    %p168 = por %p166, %p167
    %p170 = scmp.ne.s32.totalorder %s155, %s169
    %p171 = scmp.eq.s32.totalorder %s19, 0
    %p172 = por %p170, %p171
    %s173 = ssub.s32 %s13, %s20
    %p174 = scmp.eq.s32.totalorder %s173, 0
    %s176 = sadd.s32 %s175, 1
    %s177 = scalar_select %p174, %s175, %s176
    %p180 = pneg %p174
    %p181 = scmp.eq.s32.totalorder %s13, 1
    %p182 = por %p180, %p181
    %p183 = scmp.ne.s32.totalorder %s175, %s178
    %p184 = scmp.eq.s32.totalorder %s13, 0
    %p185 = por %p183, %p184
    %p186 = scmp.ne.s32.totalorder %s175, %s178
    %p187 = scmp.eq.s32.totalorder %s18, 1
    %p188 = por %p186, %p187
    %p189 = scmp.ne.s32.totalorder %s178, %s179
    %p190 = scmp.eq.s32.totalorder %s18, 0
    %p191 = por %p189, %p190
    %p192 = scmp.ne.s32.totalorder %s178, %s179
    %p193 = scmp.eq.s32.totalorder %s19, 1
    %p194 = por %p192, %p193
    %p196 = scmp.ne.s32.totalorder %s179, %s195
    %p197 = scmp.eq.s32.totalorder %s19, 0
    %p198 = por %p196, %p197
    %p199 = scmp.le.s32.totalorder 1, %s13
    %p200 = scmp.lt.s32.totalorder %s13, 3
    %p201 = pnand %p199, %p200
    %p202 = pneg %p201
    // Predicated region
    $region9: #{_forward.1} parent=5 // pred_check
      _
    $region10: #{_forward.1} parent=5 // pred_check_branch
      %204 = sbr.rel (%p201) target = $region12
    $region11: #{_forward.1} parent=5 // pred_region
      %s205 = ssub.s32 %s13, 1
      // Predicated region
      $region13: #{_forward.1} parent=11 // pred_check
        %p206 = pneg %p60
      $region14: #{_forward.1} parent=11 // pred_check_branch
        %208 = sbr.rel (%p206) target = $region16
      $region15: #{_forward.1} parent=11 // pred_region
        _
      $region16: #{_forward.1} parent=11 // pred_fallthru
        _
      // Predicated region
      $region17: #{_forward.1} parent=11 // pred_check
        %p209 = pneg %p81
      $region18: #{_forward.1} parent=11 // pred_check_branch
        %211 = sbr.rel (%p209) target = $region20
      $region19: #{_forward.1} parent=11 // pred_region
        _
      $region20: #{_forward.1} parent=11 // pred_fallthru
        _
      // Predicated region
      $region21: #{_forward.1} parent=11 // pred_check
        %p212 = pneg %p102
      $region22: #{_forward.1} parent=11 // pred_check_branch
        %214 = sbr.rel (%p212) target = $region24
      $region23: #{_forward.1} parent=11 // pred_region
        _
      $region24: #{_forward.1} parent=11 // pred_fallthru
        _
      // Predicated region
      $region25: #{_forward.1} parent=11 // pred_check
        %p215 = pneg %p123
      $region26: #{_forward.1} parent=11 // pred_check_branch
        %217 = sbr.rel (%p215) target = $region28
      $region27: #{_forward.1} parent=11 // pred_region
        _
      $region28: #{_forward.1} parent=11 // pred_fallthru
        _
      // Predicated region
      $region29: #{_forward.1} parent=11 // pred_check
        %p218 = pneg %p144
      $region30: #{_forward.1} parent=11 // pred_check_branch
        %220 = sbr.rel (%p218) target = $region32
      $region31: #{_forward.1} parent=11 // pred_region
        _
      $region32: #{_forward.1} parent=11 // pred_fallthru
        _
      // Predicated region
      $region33: #{_forward.1} parent=11 // pred_check
        %p221 = pneg %p165
      $region34: #{_forward.1} parent=11 // pred_check_branch
        %223 = sbr.rel (%p221) target = $region36
      $region35: #{_forward.1} parent=11 // pred_region
        _
      $region36: #{_forward.1} parent=11 // pred_fallthru
        _
    $region12: #{_forward.1} parent=5 // pred_fallthru
      _
    %p224 = scmp.lt.s32.totalorder %s13, 2
    // Predicated region
    $region37: #{_forward.1} parent=5 // pred_check
      %p225 = pneg %p224
    $region38: #{_forward.1} parent=5 // pred_check_branch
      %227 = sbr.rel (%p225) target = $region40
    $region39: #{_forward.1} parent=5 // pred_region
      // Predicated region
      $region41: #{_forward.1} parent=39 // pred_check
        %p228 = pneg %p33
      $region42: #{_forward.1} parent=39 // pred_check_branch
        %230 = sbr.rel (%p228) target = $region44
      $region43: #{_forward.1} parent=39 // pred_region
        %p231 = scmp.lt.s32.totalorder %s13, 1
        %s232 = scalar_select %p231, %s13, 1
        %s233 = smul.addr %s232, 32
        %s234 = smul.addr %s233, 4
        %s235 = scalar_lea.vmem %s0, %s234
      $region44: #{_forward.1} parent=39 // pred_fallthru
        _
    $region40: #{_forward.1} parent=5 // pred_fallthru
      _
    %p236 = scmp.le.s32.totalorder 1, %s13
    %p237 = scmp.lt.s32.totalorder %s13, 3
    %p238 = pnand %p236, %p237
    %p239 = pneg %p238
    // Predicated region
    $region45: #{_forward.1} parent=5 // pred_check
      _
    $region46: #{_forward.1} parent=5 // pred_check_branch
      %241 = sbr.rel (%p238) target = $region48
    $region47: #{_forward.1} parent=5 // pred_region
      %s242 = ssub.s32 %s13, 1
      %p243 = scmp.lt.s32.totalorder %s18, 1
      %s244 = scalar_select %p243, %s18, 1
      %s245 = smul.addr %s244, 32
      %s246 = smul.addr %s245, 4
      %s247 = scalar_lea.vmem %s0, %s246
      %p248 = pneg %p39
      %p249 = pneg %p36
      %p250 = pneg %p60
      %p251 = pneg %p57
      %p252 = pneg %p81
      %p253 = pneg %p78
      %p254 = pneg %p102
      %p255 = pneg %p99
      %p256 = pneg %p123
      %p257 = pneg %p120
      %p258 = pneg %p144
      %p259 = pneg %p141
      %p260 = pneg %p165
      %p261 = pneg %p162
      %p262 = pneg %p191
      %p263 = pneg %p188
      %p264 = scmp.lt.s32.totalorder %s18, 1
      %s265 = scalar_select %p264, %s18, 1
      %s266 = smul.addr %s265, 48
      %s267 = smul.addr %s266, 8
      %s268 = scalar_lea.vmem %s7, %s267
      %p269 = scmp.lt.s32.totalorder %s18, 1
      %s270 = scalar_select %p269, %s18, 1
      %s271 = smul.addr %s270, 32
      %s272 = smul.addr %s271, 4
      %s273 = scalar_lea.vmem %s0, %s272
      %p274 = scmp.lt.s32.totalorder %s18, 1
      %s275 = scalar_select %p274, %s18, 1
      %s276 = smul.addr %s275, 48
      %s277 = smul.addr %s276, 8
      %s278 = scalar_lea.vmem %s7, %s277
      loop: start=0, step=1, limit=14
      $region49: #{_forward.1} parent=47 // loop_pre_header
        _
      $region50: #{_forward.1} parent=47 // loop_header
        %s281 = sphi 0, %s285
        %p282 = scmp.ge.s32.totalorder %s281, 14
      $region51: #{_forward.1} parent=47 // loop_header_branch
        %284 = sbr.rel (%p282) target = $region55
      $region52: #{_forward.1} parent=47 // loop_body
        %s286 = smul.u32 %s281, 2
        %s287 = smul.addr %s286, 4
        %s288 = scalar_lea.vmem %s273, %s287
        %v289 = vld [vmem:[%s288] sm:$0xf]
        %v290 = vld [vmem:[%s288 + $0x4] sm:$0x7]
        %v291 = vld [vmem:[%s1] sm:$0x3]
        %v292 = vld [vmem:[%s288 + $0x4] sm:$0xf]
        %s293 = scalar_lea.vmem %s1, 2
        %v294 = vld [vmem:[%s293] sm:$0x3]
        %v297 = vunpack.c.l.b16 %v289
        %v298 = vunpack.c.l.b16 %v292
        %v299 = vpack.c.b16 %v298, %v297
        %v301 = vshrl.u32 %v299, 16
        %v303 = vshll.u32 %v299, 16
        %v305 = vrot.slane %v303, 1
        %v306 = vor.u32 %v301, %v305
        %vm307 = vcmask 31744
        %v309 = vsel %vm307, %v306, 0
        %vm311 = vcmask 1041408
        %v313 = vsel %vm311, %v294, 0
        %315 = vmatprep.subr.bf16.mxu0 0
        %316 = vmatpush1.bf16.msra.mxu0 %v313
        %317 = vmatprep.subr.bf16.mxu0 0
        %318 = vmatpush1.bf16.msra.mxu0 0
        %319 = vmatprep.subr.bf16.mxu0 0
        %320 = vmatpush1.bf16.msra.mxu0 0
        %321 = vmatprep.subr.bf16.mxu0 0
        %322 = vmatpush1.bf16.msra.mxu0 0
        %323 = vmatprep.subr.bf16.mxu0 0
        %324 = vmatpush1.bf16.msra.mxu0 0
        %325 = vmatprep.subr.bf16.mxu0 0
        %326 = vmatpush1.bf16.msra.mxu0 0
        %327 = vmatprep.subr.bf16.mxu0 0
        %328 = vmatpush1.bf16.msra.mxu0 0
        %329 = vmatprep.subr.bf16.mxu0 0
        %330 = vmatpush1.bf16.msra.mxu0 0
        %331 = vmatprep.subr.bf16.mxu0 0
        %332 = vmatpush1.bf16.msra.mxu0 0
        %333 = vmatprep.subr.bf16.mxu0 0
        %334 = vmatpush1.bf16.msra.mxu0 0
        %335 = vmatprep.subr.bf16.mxu0 0
        %336 = vmatpush1.bf16.msra.mxu0 0
        %337 = vmatprep.subr.bf16.mxu0 0
        %338 = vmatpush1.bf16.msra.mxu0 0
        %339 = vmatprep.subr.bf16.mxu0 0
        %340 = vmatpush1.bf16.msra.mxu0 0
        %341 = vmatprep.subr.bf16.mxu0 0
        %342 = vmatpush1.bf16.msra.mxu0 0
        %343 = vmatprep.subr.bf16.mxu0 0
        %344 = vmatpush1.bf16.msra.mxu0 0
        %345 = vmatprep.subr.bf16.mxu0 0
        %346 = vmatpush1.bf16.msra.mxu0 0
        %347 = vmatprep.mubr.bf16.mxu0 0
        %348 = vmatmul.mubr.bf16.gmra.mrb[0].mxu0 %v309
        %v349 = vpop.f32.mrb[0].mxu0
        %v350 = vadd.f32 0.0, %v349
        %v351 = vpop.f32.mrb[0].mxu0
        %v352 = vpop.f32.mrb[0].mxu0
        %v353 = vadd.f32 0.0, %v352
        %v354 = vpop.f32.mrb[0].mxu0
        %355 = vdwg.mxu0
        %v357 = vunpack.c.l.b16 %v290
        %v358 = vpack.c.b16 %v357, %v297
        %v360 = vsel %vm307, %v358, 0
        %v363 = vsel %vm311, %v291, 0
        %365 = vmatprep.subr.bf16.mxu0 0
        %366 = vmatpush1.bf16.msra.mxu0 %v363
        %367 = vmatprep.subr.bf16.mxu0 0
        %368 = vmatpush1.bf16.msra.mxu0 0
        %369 = vmatprep.subr.bf16.mxu0 0
        %370 = vmatpush1.bf16.msra.mxu0 0
        %371 = vmatprep.subr.bf16.mxu0 0
        %372 = vmatpush1.bf16.msra.mxu0 0
        %373 = vmatprep.subr.bf16.mxu0 0
        %374 = vmatpush1.bf16.msra.mxu0 0
        %375 = vmatprep.subr.bf16.mxu0 0
        %376 = vmatpush1.bf16.msra.mxu0 0
        %377 = vmatprep.subr.bf16.mxu0 0
        %378 = vmatpush1.bf16.msra.mxu0 0
        %379 = vmatprep.subr.bf16.mxu0 0
        %380 = vmatpush1.bf16.msra.mxu0 0
        %381 = vmatprep.subr.bf16.mxu0 0
        %382 = vmatpush1.bf16.msra.mxu0 0
        %383 = vmatprep.subr.bf16.mxu0 0
        %384 = vmatpush1.bf16.msra.mxu0 0
        %385 = vmatprep.subr.bf16.mxu0 0
        %386 = vmatpush1.bf16.msra.mxu0 0
        %387 = vmatprep.subr.bf16.mxu0 0
        %388 = vmatpush1.bf16.msra.mxu0 0
        %389 = vmatprep.subr.bf16.mxu0 0
        %390 = vmatpush1.bf16.msra.mxu0 0
        %391 = vmatprep.subr.bf16.mxu0 0
        %392 = vmatpush1.bf16.msra.mxu0 0
        %393 = vmatprep.subr.bf16.mxu0 0
        %394 = vmatpush1.bf16.msra.mxu0 0
        %395 = vmatprep.subr.bf16.mxu0 0
        %396 = vmatpush1.bf16.msra.mxu0 0
        %397 = vmatprep.mubr.bf16.mxu0 0
        %398 = vmatmul.mubr.bf16.gmra.mrb[0].mxu0 %v360
        %v399 = vpop.f32.mrb[0].mxu0
        %v400 = vadd.f32 %v350, %v399
        %v401 = vpop.f32.mrb[0].mxu0
        %v402 = vpop.f32.mrb[0].mxu0
        %v403 = vadd.f32 %v353, %v402
        %v404 = vpop.f32.mrb[0].mxu0
        %405 = vdwg.mxu0
        %v406 = vld [vmem:[%s288] sm:$0xe]
        %s407 = scalar_lea.vmem %s1, 4
        %v408 = vld [vmem:[%s407] sm:$0x3]
        %v410 = vunpack.c.l.b16 %v406
        %v411 = vpack.c.b16 %v298, %v410
        %v412 = vrot.slane %v411, 1
        %v414 = vsel %vm307, %v412, 0
        %v417 = vsel %vm311, %v408, 0
        %419 = vmatprep.subr.bf16.mxu0 0
        %420 = vmatpush1.bf16.msra.mxu0 %v417
        %421 = vmatprep.subr.bf16.mxu0 0
        %422 = vmatpush1.bf16.msra.mxu0 0
        %423 = vmatprep.subr.bf16.mxu0 0
        %424 = vmatpush1.bf16.msra.mxu0 0
        %425 = vmatprep.subr.bf16.mxu0 0
        %426 = vmatpush1.bf16.msra.mxu0 0
        %427 = vmatprep.subr.bf16.mxu0 0
        %428 = vmatpush1.bf16.msra.mxu0 0
        %429 = vmatprep.subr.bf16.mxu0 0
        %430 = vmatpush1.bf16.msra.mxu0 0
        %431 = vmatprep.subr.bf16.mxu0 0
        %432 = vmatpush1.bf16.msra.mxu0 0
        %433 = vmatprep.subr.bf16.mxu0 0
        %434 = vmatpush1.bf16.msra.mxu0 0
        %435 = vmatprep.subr.bf16.mxu0 0
        %436 = vmatpush1.bf16.msra.mxu0 0
        %437 = vmatprep.subr.bf16.mxu0 0
        %438 = vmatpush1.bf16.msra.mxu0 0
        %439 = vmatprep.subr.bf16.mxu0 0
        %440 = vmatpush1.bf16.msra.mxu0 0
        %441 = vmatprep.subr.bf16.mxu0 0
        %442 = vmatpush1.bf16.msra.mxu0 0
        %443 = vmatprep.subr.bf16.mxu0 0
        %444 = vmatpush1.bf16.msra.mxu0 0
        %445 = vmatprep.subr.bf16.mxu0 0
        %446 = vmatpush1.bf16.msra.mxu0 0
        %447 = vmatprep.subr.bf16.mxu0 0
        %448 = vmatpush1.bf16.msra.mxu0 0
        %449 = vmatprep.subr.bf16.mxu0 0
        %450 = vmatpush1.bf16.msra.mxu0 0
        %451 = vmatprep.mubr.bf16.mxu0 0
        %452 = vmatmul.mubr.bf16.gmra.mrb[0].mxu0 %v414
        %v453 = vpop.f32.mrb[0].mxu0
        %v454 = vadd.f32 0.0, %v453
        %v455 = vpop.f32.mrb[0].mxu0
        %v456 = vpop.f32.mrb[0].mxu0
        %v457 = vadd.f32 0.0, %v456
        %v458 = vpop.f32.mrb[0].mxu0
        %459 = vdwg.mxu0
        %v460 = vadd.f32 %v400, %v454
        %v461 = vadd.f32 %v403, %v457
        %s462 = sadd.s32 %s281, 1
        %s463 = smul.u32 %s462, 2
        %s464 = smul.addr %s463, 4
        %s465 = scalar_lea.vmem %s273, %s464
        %v466 = vld [vmem:[%s465] sm:$0xf]
        %v467 = vld [vmem:[%s465 + $0x4] sm:$0x7]
        %s468 = scalar_lea.vmem %s1, 6
        %v469 = vld [vmem:[%s468] sm:$0x3]
        %v472 = vunpack.c.l.b16 %v466
        %v473 = vunpack.c.l.b16 %v467
        %v474 = vpack.c.b16 %v473, %v472
        %v476 = vsel %vm307, %v474, 0
        %v479 = vsel %vm311, %v469, 0
        %481 = vmatprep.subr.bf16.mxu0 0
        %482 = vmatpush1.bf16.msra.mxu0 %v479
        %483 = vmatprep.subr.bf16.mxu0 0
        %484 = vmatpush1.bf16.msra.mxu0 0
        %485 = vmatprep.subr.bf16.mxu0 0
        %486 = vmatpush1.bf16.msra.mxu0 0
        %487 = vmatprep.subr.bf16.mxu0 0
        %488 = vmatpush1.bf16.msra.mxu0 0
        %489 = vmatprep.subr.bf16.mxu0 0
        %490 = vmatpush1.bf16.msra.mxu0 0
        %491 = vmatprep.subr.bf16.mxu0 0
        %492 = vmatpush1.bf16.msra.mxu0 0
        %493 = vmatprep.subr.bf16.mxu0 0
        %494 = vmatpush1.bf16.msra.mxu0 0
        %495 = vmatprep.subr.bf16.mxu0 0
        %496 = vmatpush1.bf16.msra.mxu0 0
        %497 = vmatprep.subr.bf16.mxu0 0
        %498 = vmatpush1.bf16.msra.mxu0 0
        %499 = vmatprep.subr.bf16.mxu0 0
        %500 = vmatpush1.bf16.msra.mxu0 0
        %501 = vmatprep.subr.bf16.mxu0 0
        %502 = vmatpush1.bf16.msra.mxu0 0
        %503 = vmatprep.subr.bf16.mxu0 0
        %504 = vmatpush1.bf16.msra.mxu0 0
        %505 = vmatprep.subr.bf16.mxu0 0
        %506 = vmatpush1.bf16.msra.mxu0 0
        %507 = vmatprep.subr.bf16.mxu0 0
        %508 = vmatpush1.bf16.msra.mxu0 0
        %509 = vmatprep.subr.bf16.mxu0 0
        %510 = vmatpush1.bf16.msra.mxu0 0
        %511 = vmatprep.subr.bf16.mxu0 0
        %512 = vmatpush1.bf16.msra.mxu0 0
        %513 = vmatprep.mubr.bf16.mxu0 0
        %514 = vmatmul.mubr.bf16.gmra.mrb[0].mxu0 %v476
        %v515 = vpop.f32.mrb[0].mxu0
        %v516 = vadd.f32 0.0, %v515
        %v517 = vpop.f32.mrb[0].mxu0
        %v518 = vpop.f32.mrb[0].mxu0
        %v519 = vadd.f32 0.0, %v518
        %v520 = vpop.f32.mrb[0].mxu0
        %521 = vdwg.mxu0
        %v522 = vadd.f32 %v460, %v516
        %v523 = vadd.f32 %v461, %v519
        %v524 = vld [vmem:[%s465 + $0x4] sm:$0xf]
        %s525 = scalar_lea.vmem %s1, 8
        %v526 = vld [vmem:[%s525] sm:$0x3]
        %v528 = vunpack.c.l.b16 %v524
        %v529 = vpack.c.b16 %v528, %v472
        %v531 = vshrl.u32 %v529, 16
        %v533 = vshll.u32 %v529, 16
        %v535 = vrot.slane %v533, 1
        %v536 = vor.u32 %v531, %v535
        %v538 = vsel %vm307, %v536, 0
        %v541 = vsel %vm311, %v526, 0
        %543 = vmatprep.subr.bf16.mxu0 0
        %544 = vmatpush1.bf16.msra.mxu0 %v541
        %545 = vmatprep.subr.bf16.mxu0 0
        %546 = vmatpush1.bf16.msra.mxu0 0
        %547 = vmatprep.subr.bf16.mxu0 0
        %548 = vmatpush1.bf16.msra.mxu0 0
        %549 = vmatprep.subr.bf16.mxu0 0
        %550 = vmatpush1.bf16.msra.mxu0 0
        %551 = vmatprep.subr.bf16.mxu0 0
        %552 = vmatpush1.bf16.msra.mxu0 0
        %553 = vmatprep.subr.bf16.mxu0 0
        %554 = vmatpush1.bf16.msra.mxu0 0
        %555 = vmatprep.subr.bf16.mxu0 0
        %556 = vmatpush1.bf16.msra.mxu0 0
        %557 = vmatprep.subr.bf16.mxu0 0
        %558 = vmatpush1.bf16.msra.mxu0 0
        %559 = vmatprep.subr.bf16.mxu0 0
        %560 = vmatpush1.bf16.msra.mxu0 0
        %561 = vmatprep.subr.bf16.mxu0 0
        %562 = vmatpush1.bf16.msra.mxu0 0
        %563 = vmatprep.subr.bf16.mxu0 0
        %564 = vmatpush1.bf16.msra.mxu0 0
        %565 = vmatprep.subr.bf16.mxu0 0
        %566 = vmatpush1.bf16.msra.mxu0 0
        %567 = vmatprep.subr.bf16.mxu0 0
        %568 = vmatpush1.bf16.msra.mxu0 0
        %569 = vmatprep.subr.bf16.mxu0 0
        %570 = vmatpush1.bf16.msra.mxu0 0
        %571 = vmatprep.subr.bf16.mxu0 0
        %572 = vmatpush1.bf16.msra.mxu0 0
        %573 = vmatprep.subr.bf16.mxu0 0
        %574 = vmatpush1.bf16.msra.mxu0 0
        %575 = vmatprep.mubr.bf16.mxu0 0
        %576 = vmatmul.mubr.bf16.gmra.mrb[0].mxu0 %v538
        %v577 = vpop.f32.mrb[0].mxu0
        %v578 = vadd.f32 0.0, %v577
        %v579 = vpop.f32.mrb[0].mxu0
        %v580 = vpop.f32.mrb[0].mxu0
        %v581 = vadd.f32 0.0, %v580
        %v582 = vpop.f32.mrb[0].mxu0
        %583 = vdwg.mxu0
        %v584 = vadd.f32 %v522, %v578
        %v585 = vadd.f32 %v523, %v581
        %v586 = vld [vmem:[%s465] sm:$0xe]
        %s587 = scalar_lea.vmem %s1, 10
        %v588 = vld [vmem:[%s587] sm:$0x3]
        %v590 = vunpack.c.l.b16 %v586
        %v591 = vpack.c.b16 %v528, %v590
        %v592 = vrot.slane %v591, 1
        %v594 = vsel %vm307, %v592, 0
        %v597 = vsel %vm311, %v588, 0
        %599 = vmatprep.subr.bf16.mxu0 0
        %600 = vmatpush1.bf16.msra.mxu0 %v597
        %601 = vmatprep.subr.bf16.mxu0 0
        %602 = vmatpush1.bf16.msra.mxu0 0
        %603 = vmatprep.subr.bf16.mxu0 0
        %604 = vmatpush1.bf16.msra.mxu0 0
        %605 = vmatprep.subr.bf16.mxu0 0
        %606 = vmatpush1.bf16.msra.mxu0 0
        %607 = vmatprep.subr.bf16.mxu0 0
        %608 = vmatpush1.bf16.msra.mxu0 0
        %609 = vmatprep.subr.bf16.mxu0 0
        %610 = vmatpush1.bf16.msra.mxu0 0
        %611 = vmatprep.subr.bf16.mxu0 0
        %612 = vmatpush1.bf16.msra.mxu0 0
        %613 = vmatprep.subr.bf16.mxu0 0
        %614 = vmatpush1.bf16.msra.mxu0 0
        %615 = vmatprep.subr.bf16.mxu0 0
        %616 = vmatpush1.bf16.msra.mxu0 0
        %617 = vmatprep.subr.bf16.mxu0 0
        %618 = vmatpush1.bf16.msra.mxu0 0
        %619 = vmatprep.subr.bf16.mxu0 0
        %620 = vmatpush1.bf16.msra.mxu0 0
        %621 = vmatprep.subr.bf16.mxu0 0
        %622 = vmatpush1.bf16.msra.mxu0 0
        %623 = vmatprep.subr.bf16.mxu0 0
        %624 = vmatpush1.bf16.msra.mxu0 0
        %625 = vmatprep.subr.bf16.mxu0 0
        %626 = vmatpush1.bf16.msra.mxu0 0
        %627 = vmatprep.subr.bf16.mxu0 0
        %628 = vmatpush1.bf16.msra.mxu0 0
        %629 = vmatprep.subr.bf16.mxu0 0
        %630 = vmatpush1.bf16.msra.mxu0 0
        %631 = vmatprep.mubr.bf16.mxu0 0
        %632 = vmatmul.mubr.bf16.gmra.mrb[0].mxu0 %v594
        %v633 = vpop.f32.mrb[0].mxu0
        %v634 = vadd.f32 0.0, %v633
        %v635 = vpop.f32.mrb[0].mxu0
        %v636 = vpop.f32.mrb[0].mxu0
        %v637 = vadd.f32 0.0, %v636
        %v638 = vpop.f32.mrb[0].mxu0
        %639 = vdwg.mxu0
        %v640 = vadd.f32 %v584, %v634
        %v641 = vadd.f32 %v585, %v637
        %s642 = sadd.s32 %s281, 2
        %s643 = smul.u32 %s642, 2
        %s644 = smul.addr %s643, 4
        %s645 = scalar_lea.vmem %s273, %s644
        %v646 = vld [vmem:[%s645] sm:$0xf]
        %v647 = vld [vmem:[%s645 + $0x4] sm:$0x7]
        %s648 = scalar_lea.vmem %s1, 12
        %v649 = vld [vmem:[%s648] sm:$0x3]
        %v652 = vunpack.c.l.b16 %v646
        %v653 = vunpack.c.l.b16 %v647
        %v654 = vpack.c.b16 %v653, %v652
        %v656 = vsel %vm307, %v654, 0
        %v659 = vsel %vm311, %v649, 0
        %661 = vmatprep.subr.bf16.mxu0 0
        %662 = vmatpush1.bf16.msra.mxu0 %v659
        %663 = vmatprep.subr.bf16.mxu0 0
        %664 = vmatpush1.bf16.msra.mxu0 0
        %665 = vmatprep.subr.bf16.mxu0 0
        %666 = vmatpush1.bf16.msra.mxu0 0
        %667 = vmatprep.subr.bf16.mxu0 0
        %668 = vmatpush1.bf16.msra.mxu0 0
        %669 = vmatprep.subr.bf16.mxu0 0
        %670 = vmatpush1.bf16.msra.mxu0 0
        %671 = vmatprep.subr.bf16.mxu0 0
        %672 = vmatpush1.bf16.msra.mxu0 0
        %673 = vmatprep.subr.bf16.mxu0 0
        %674 = vmatpush1.bf16.msra.mxu0 0
        %675 = vmatprep.subr.bf16.mxu0 0
        %676 = vmatpush1.bf16.msra.mxu0 0
        %677 = vmatprep.subr.bf16.mxu0 0
        %678 = vmatpush1.bf16.msra.mxu0 0
        %679 = vmatprep.subr.bf16.mxu0 0
        %680 = vmatpush1.bf16.msra.mxu0 0
        %681 = vmatprep.subr.bf16.mxu0 0
        %682 = vmatpush1.bf16.msra.mxu0 0
        %683 = vmatprep.subr.bf16.mxu0 0
        %684 = vmatpush1.bf16.msra.mxu0 0
        %685 = vmatprep.subr.bf16.mxu0 0
        %686 = vmatpush1.bf16.msra.mxu0 0
        %687 = vmatprep.subr.bf16.mxu0 0
        %688 = vmatpush1.bf16.msra.mxu0 0
        %689 = vmatprep.subr.bf16.mxu0 0
        %690 = vmatpush1.bf16.msra.mxu0 0
        %691 = vmatprep.subr.bf16.mxu0 0
        %692 = vmatpush1.bf16.msra.mxu0 0
        %693 = vmatprep.mubr.bf16.mxu0 0
        %694 = vmatmul.mubr.bf16.gmra.mrb[0].mxu0 %v656
        %v695 = vpop.f32.mrb[0].mxu0
        %v696 = vadd.f32 0.0, %v695
        %v697 = vpop.f32.mrb[0].mxu0
        %v698 = vpop.f32.mrb[0].mxu0
        %v699 = vadd.f32 0.0, %v698
        %v700 = vpop.f32.mrb[0].mxu0
        %701 = vdwg.mxu0
        %v702 = vadd.f32 %v640, %v696
        %v703 = vadd.f32 %v641, %v699
        %v704 = vld [vmem:[%s645 + $0x4] sm:$0xf]
        %s705 = scalar_lea.vmem %s1, 14
        %v706 = vld [vmem:[%s705] sm:$0x3]
        %v708 = vunpack.c.l.b16 %v704
        %v709 = vpack.c.b16 %v708, %v652
        %v711 = vshrl.u32 %v709, 16
        %v713 = vshll.u32 %v709, 16
        %v715 = vrot.slane %v713, 1
        %v716 = vor.u32 %v711, %v715
        %v718 = vsel %vm307, %v716, 0
        %v721 = vsel %vm311, %v706, 0
        %723 = vmatprep.subr.bf16.mxu0 0
        %724 = vmatpush1.bf16.msra.mxu0 %v721
        %725 = vmatprep.subr.bf16.mxu0 0
        %726 = vmatpush1.bf16.msra.mxu0 0
        %727 = vmatprep.subr.bf16.mxu0 0
        %728 = vmatpush1.bf16.msra.mxu0 0
        %729 = vmatprep.subr.bf16.mxu0 0
        %730 = vmatpush1.bf16.msra.mxu0 0
        %731 = vmatprep.subr.bf16.mxu0 0
        %732 = vmatpush1.bf16.msra.mxu0 0
        %733 = vmatprep.subr.bf16.mxu0 0
        %734 = vmatpush1.bf16.msra.mxu0 0
        %735 = vmatprep.subr.bf16.mxu0 0
        %736 = vmatpush1.bf16.msra.mxu0 0
        %737 = vmatprep.subr.bf16.mxu0 0
        %738 = vmatpush1.bf16.msra.mxu0 0
        %739 = vmatprep.subr.bf16.mxu0 0
        %740 = vmatpush1.bf16.msra.mxu0 0
        %741 = vmatprep.subr.bf16.mxu0 0
        %742 = vmatpush1.bf16.msra.mxu0 0
        %743 = vmatprep.subr.bf16.mxu0 0
        %744 = vmatpush1.bf16.msra.mxu0 0
        %745 = vmatprep.subr.bf16.mxu0 0
        %746 = vmatpush1.bf16.msra.mxu0 0
        %747 = vmatprep.subr.bf16.mxu0 0
        %748 = vmatpush1.bf16.msra.mxu0 0
        %749 = vmatprep.subr.bf16.mxu0 0
        %750 = vmatpush1.bf16.msra.mxu0 0
        %751 = vmatprep.subr.bf16.mxu0 0
        %752 = vmatpush1.bf16.msra.mxu0 0
        %753 = vmatprep.subr.bf16.mxu0 0
        %754 = vmatpush1.bf16.msra.mxu0 0
        %755 = vmatprep.mubr.bf16.mxu0 0
        %756 = vmatmul.mubr.bf16.gmra.mrb[0].mxu0 %v718
        %v757 = vpop.f32.mrb[0].mxu0
        %v758 = vadd.f32 0.0, %v757
        %v759 = vpop.f32.mrb[0].mxu0
        %v760 = vpop.f32.mrb[0].mxu0
        %v761 = vadd.f32 0.0, %v760
        %v762 = vpop.f32.mrb[0].mxu0
        %763 = vdwg.mxu0
        %v764 = vadd.f32 %v702, %v758
        %v765 = vadd.f32 %v703, %v761
        %v766 = vld [vmem:[%s645] sm:$0xe]
        %s767 = scalar_lea.vmem %s1, 16
        %v768 = vld [vmem:[%s767] sm:$0x3]
        %v770 = vunpack.c.l.b16 %v766
        %v771 = vpack.c.b16 %v708, %v770
        %v772 = vrot.slane %v771, 1
        %v774 = vsel %vm307, %v772, 0
        %v777 = vsel %vm311, %v768, 0
        %779 = vmatprep.subr.bf16.mxu0 0
        %780 = vmatpush1.bf16.msra.mxu0 %v777
        %781 = vmatprep.subr.bf16.mxu0 0
        %782 = vmatpush1.bf16.msra.mxu0 0
        %783 = vmatprep.subr.bf16.mxu0 0
        %784 = vmatpush1.bf16.msra.mxu0 0
        %785 = vmatprep.subr.bf16.mxu0 0
        %786 = vmatpush1.bf16.msra.mxu0 0
        %787 = vmatprep.subr.bf16.mxu0 0
        %788 = vmatpush1.bf16.msra.mxu0 0
        %789 = vmatprep.subr.bf16.mxu0 0
        %790 = vmatpush1.bf16.msra.mxu0 0
        %791 = vmatprep.subr.bf16.mxu0 0
        %792 = vmatpush1.bf16.msra.mxu0 0
        %793 = vmatprep.subr.bf16.mxu0 0
        %794 = vmatpush1.bf16.msra.mxu0 0
        %795 = vmatprep.subr.bf16.mxu0 0
        %796 = vmatpush1.bf16.msra.mxu0 0
        %797 = vmatprep.subr.bf16.mxu0 0
        %798 = vmatpush1.bf16.msra.mxu0 0
        %799 = vmatprep.subr.bf16.mxu0 0
        %800 = vmatpush1.bf16.msra.mxu0 0
        %801 = vmatprep.subr.bf16.mxu0 0
        %802 = vmatpush1.bf16.msra.mxu0 0
        %803 = vmatprep.subr.bf16.mxu0 0
        %804 = vmatpush1.bf16.msra.mxu0 0
        %805 = vmatprep.subr.bf16.mxu0 0
        %806 = vmatpush1.bf16.msra.mxu0 0
        %807 = vmatprep.subr.bf16.mxu0 0
        %808 = vmatpush1.bf16.msra.mxu0 0
        %809 = vmatprep.subr.bf16.mxu0 0
        %810 = vmatpush1.bf16.msra.mxu0 0
        %811 = vmatprep.mubr.bf16.mxu0 0
        %812 = vmatmul.mubr.bf16.gmra.mrb[0].mxu0 %v774
        %v813 = vpop.f32.mrb[0].mxu0
        %v814 = vadd.f32 0.0, %v813
        %v815 = vpop.f32.mrb[0].mxu0
        %v816 = vpop.f32.mrb[0].mxu0
        %v817 = vadd.f32 0.0, %v816
        %v818 = vpop.f32.mrb[0].mxu0
        %819 = vdwg.mxu0
        %v820 = vadd.f32 %v764, %v814
        %v821 = vadd.f32 %v765, %v817
        %v822 = vld [vmem:[%s2] sm:$0x1]
        %v824 = vlaneseq
        %v825 = vshrl.u32 %v824, 7
        %v826 = vsub.s32 0, %v825
        %v827 = vrot.slane %v822, %v826
        %v829 = vadd.f32 %v820, %v827
        %v830 = vadd.f32 %v821, %v827
        %v831 = vmax.f32 %v829, 0.0
        %v832 = vmax.f32 %v830, 0.0
        %v833 = vpack.c.bf16 %v832, %v831
        %v835 = vunpack.c.l.b16 %v833
        %v836 = vunpack.c.h.b16 %v833
        %v837 = vpack.c.b16 %v835, %v835
        %v838 = vpack.c.b16 %v836, %v836
        %s841 = smul.addr %s286, 4
        %s842 = scalar_lea.vmem [#allocation2], %s841
        %vm843 = vcmask 60416
        %844 = vst.msk [vmem:[%s842] sm:$0xf] %vm843, %v837
        %vm845 = vcmask 59392
        %846 = vst.msk [vmem:[%s842 + $0x4] sm:$0x7] %vm845, %v838
      $region53: #{_forward.1} parent=47 // loop_footer
        %s285 = sadd.s32 1, %s281
      $region54: #{_forward.1} parent=47 // loop_footer_branch
        %280 = sbr.rel target = $region50
      $region55: #{_forward.1} parent=47 // loop_exit
        _
      loop: start=0, step=1, limit=12
      $region56: #{_forward.1} parent=47 // loop_pre_header
        _
      $region57: #{_forward.1} parent=47 // loop_header
        %s848 = sphi 0, %s852
        %p849 = scmp.ge.s32.totalorder %s848, 12
      $region58: #{_forward.1} parent=47 // loop_header_branch
        %851 = sbr.rel (%p849) target = $region62
      $region59: #{_forward.1} parent=47 // loop_body
        %s853 = smul.u32 %s848, 2
        %s854 = smul.addr %s853, 4
        %s855 = scalar_lea.vmem [#allocation2], %s854
        %v856 = vld [vmem:[%s855] sm:$0xf]
        %v857 = vld [vmem:[%s855 + $0x4] sm:$0x3]
        %v858 = vld [vmem:[%s3] sm:$0xf]
        %v859 = vld [vmem:[%s855 + $0x4] sm:$0x7]
        %s860 = scalar_lea.vmem %s3, 4
        %v861 = vld [vmem:[%s860] sm:$0xf]
        %v864 = vunpack.c.l.b16 %v856
        %v865 = vunpack.c.l.b16 %v859
        %v866 = vpack.c.b16 %v865, %v864
        %v868 = vshrl.u32 %v866, 16
        %v870 = vshll.u32 %v866, 16
        %v872 = vrot.slane %v870, 1
        %v873 = vor.u32 %v868, %v872
        %vm874 = vcmask 64512
        %v876 = vsel %vm874, %v873, 0
        %vm878 = vcmask 1043456
        %v880 = vsel %vm878, %v861, 0
        %882 = vmatprep.subr.bf16.mxu0 0
        %883 = vmatpush1.bf16.msra.mxu0 %v880
        %884 = vmatprep.subr.bf16.mxu0 0
        %885 = vmatpush1.bf16.msra.mxu0 0
        %886 = vmatprep.subr.bf16.mxu0 0
        %887 = vmatpush1.bf16.msra.mxu0 0
        %888 = vmatprep.subr.bf16.mxu0 0
        %889 = vmatpush1.bf16.msra.mxu0 0
        %890 = vmatprep.subr.bf16.mxu0 0
        %891 = vmatpush1.bf16.msra.mxu0 0
        %892 = vmatprep.subr.bf16.mxu0 0
        %893 = vmatpush1.bf16.msra.mxu0 0
        %894 = vmatprep.subr.bf16.mxu0 0
        %895 = vmatpush1.bf16.msra.mxu0 0
        %896 = vmatprep.subr.bf16.mxu0 0
        %897 = vmatpush1.bf16.msra.mxu0 0
        %898 = vmatprep.subr.bf16.mxu0 0
        %899 = vmatpush1.bf16.msra.mxu0 0
        %900 = vmatprep.subr.bf16.mxu0 0
        %901 = vmatpush1.bf16.msra.mxu0 0
        %902 = vmatprep.subr.bf16.mxu0 0
        %903 = vmatpush1.bf16.msra.mxu0 0
        %904 = vmatprep.subr.bf16.mxu0 0
        %905 = vmatpush1.bf16.msra.mxu0 0
        %906 = vmatprep.subr.bf16.mxu0 0
        %907 = vmatpush1.bf16.msra.mxu0 0
        %908 = vmatprep.subr.bf16.mxu0 0
        %909 = vmatpush1.bf16.msra.mxu0 0
        %910 = vmatprep.subr.bf16.mxu0 0
        %911 = vmatpush1.bf16.msra.mxu0 0
        %912 = vmatprep.subr.bf16.mxu0 0
        %913 = vmatpush1.bf16.msra.mxu0 0
        %914 = vmatprep.mubr.bf16.mxu0 0
        %915 = vmatmul.mubr.bf16.gmra.mrb[0].mxu0 %v876
        %v916 = vpop.f32.mrb[0].mxu0
        %v917 = vadd.f32 0.0, %v916
        %v918 = vpop.f32.mrb[0].mxu0
        %v919 = vpop.f32.mrb[0].mxu0
        %v920 = vadd.f32 0.0, %v919
        %v921 = vpop.f32.mrb[0].mxu0
        %922 = vdwg.mxu0
        %v924 = vunpack.c.l.b16 %v857
        %v925 = vpack.c.b16 %v924, %v864
        %v927 = vsel %vm874, %v925, 0
        %v930 = vsel %vm878, %v858, 0
        %932 = vmatprep.subr.bf16.mxu0 0
        %933 = vmatpush1.bf16.msra.mxu0 %v930
        %934 = vmatprep.subr.bf16.mxu0 0
        %935 = vmatpush1.bf16.msra.mxu0 0
        %936 = vmatprep.subr.bf16.mxu0 0
        %937 = vmatpush1.bf16.msra.mxu0 0
        %938 = vmatprep.subr.bf16.mxu0 0
        %939 = vmatpush1.bf16.msra.mxu0 0
        %940 = vmatprep.subr.bf16.mxu0 0
        %941 = vmatpush1.bf16.msra.mxu0 0
        %942 = vmatprep.subr.bf16.mxu0 0
        %943 = vmatpush1.bf16.msra.mxu0 0
        %944 = vmatprep.subr.bf16.mxu0 0
        %945 = vmatpush1.bf16.msra.mxu0 0
        %946 = vmatprep.subr.bf16.mxu0 0
        %947 = vmatpush1.bf16.msra.mxu0 0
        %948 = vmatprep.subr.bf16.mxu0 0
        %949 = vmatpush1.bf16.msra.mxu0 0
        %950 = vmatprep.subr.bf16.mxu0 0
        %951 = vmatpush1.bf16.msra.mxu0 0
        %952 = vmatprep.subr.bf16.mxu0 0
        %953 = vmatpush1.bf16.msra.mxu0 0
        %954 = vmatprep.subr.bf16.mxu0 0
        %955 = vmatpush1.bf16.msra.mxu0 0
        %956 = vmatprep.subr.bf16.mxu0 0
        %957 = vmatpush1.bf16.msra.mxu0 0
        %958 = vmatprep.subr.bf16.mxu0 0
        %959 = vmatpush1.bf16.msra.mxu0 0
        %960 = vmatprep.subr.bf16.mxu0 0
        %961 = vmatpush1.bf16.msra.mxu0 0
        %962 = vmatprep.subr.bf16.mxu0 0
        %963 = vmatpush1.bf16.msra.mxu0 0
        %964 = vmatprep.mubr.bf16.mxu0 0
        %965 = vmatmul.mubr.bf16.gmra.mrb[0].mxu0 %v927
        %v966 = vpop.f32.mrb[0].mxu0
        %v967 = vadd.f32 %v917, %v966
        %v968 = vpop.f32.mrb[0].mxu0
        %v969 = vpop.f32.mrb[0].mxu0
        %v970 = vadd.f32 %v920, %v969
        %v971 = vpop.f32.mrb[0].mxu0
        %972 = vdwg.mxu0
        %v973 = vld [vmem:[%s855] sm:$0xe]
        %s974 = scalar_lea.vmem %s3, 8
        %v975 = vld [vmem:[%s974] sm:$0xf]
        %v977 = vunpack.c.l.b16 %v973
        %v978 = vpack.c.b16 %v865, %v977
        %v979 = vrot.slane %v978, 1
        %v981 = vsel %vm874, %v979, 0
        %v984 = vsel %vm878, %v975, 0
        %986 = vmatprep.subr.bf16.mxu0 0
        %987 = vmatpush1.bf16.msra.mxu0 %v984
        %988 = vmatprep.subr.bf16.mxu0 0
        %989 = vmatpush1.bf16.msra.mxu0 0
        %990 = vmatprep.subr.bf16.mxu0 0
        %991 = vmatpush1.bf16.msra.mxu0 0
        %992 = vmatprep.subr.bf16.mxu0 0
        %993 = vmatpush1.bf16.msra.mxu0 0
        %994 = vmatprep.subr.bf16.mxu0 0
        %995 = vmatpush1.bf16.msra.mxu0 0
        %996 = vmatprep.subr.bf16.mxu0 0
        %997 = vmatpush1.bf16.msra.mxu0 0
        %998 = vmatprep.subr.bf16.mxu0 0
        %999 = vmatpush1.bf16.msra.mxu0 0
        %1000 = vmatprep.subr.bf16.mxu0 0
        %1001 = vmatpush1.bf16.msra.mxu0 0
        %1002 = vmatprep.subr.bf16.mxu0 0
        %1003 = vmatpush1.bf16.msra.mxu0 0
        %1004 = vmatprep.subr.bf16.mxu0 0
        %1005 = vmatpush1.bf16.msra.mxu0 0
        %1006 = vmatprep.subr.bf16.mxu0 0
        %1007 = vmatpush1.bf16.msra.mxu0 0
        %1008 = vmatprep.subr.bf16.mxu0 0
        %1009 = vmatpush1.bf16.msra.mxu0 0
        %1010 = vmatprep.subr.bf16.mxu0 0
        %1011 = vmatpush1.bf16.msra.mxu0 0
        %1012 = vmatprep.subr.bf16.mxu0 0
        %1013 = vmatpush1.bf16.msra.mxu0 0
        %1014 = vmatprep.subr.bf16.mxu0 0
        %1015 = vmatpush1.bf16.msra.mxu0 0
        %1016 = vmatprep.subr.bf16.mxu0 0
        %1017 = vmatpush1.bf16.msra.mxu0 0
        %1018 = vmatprep.mubr.bf16.mxu0 0
        %1019 = vmatmul.mubr.bf16.gmra.mrb[0].mxu0 %v981
        %v1020 = vpop.f32.mrb[0].mxu0
        %v1021 = vadd.f32 0.0, %v1020
        %v1022 = vpop.f32.mrb[0].mxu0
        %v1023 = vpop.f32.mrb[0].mxu0
        %v1024 = vadd.f32 0.0, %v1023
        %v1025 = vpop.f32.mrb[0].mxu0
        %1026 = vdwg.mxu0
        %v1027 = vadd.f32 %v967, %v1021
        %v1028 = vadd.f32 %v970, %v1024
        %s1029 = sadd.s32 %s848, 1
        %s1030 = smul.u32 %s1029, 2
        %s1031 = smul.addr %s1030, 4
        %s1032 = scalar_lea.vmem [#allocation2], %s1031
        %v1033 = vld [vmem:[%s1032] sm:$0xf]
        %v1034 = vld [vmem:[%s1032 + $0x4] sm:$0x3]
        %s1035 = scalar_lea.vmem %s3, 12
        %v1036 = vld [vmem:[%s1035] sm:$0xf]
        %v1039 = vunpack.c.l.b16 %v1033
        %v1040 = vunpack.c.l.b16 %v1034
        %v1041 = vpack.c.b16 %v1040, %v1039
        %v1043 = vsel %vm874, %v1041, 0
        %v1046 = vsel %vm878, %v1036, 0
        %1048 = vmatprep.subr.bf16.mxu0 0
        %1049 = vmatpush1.bf16.msra.mxu0 %v1046
        %1050 = vmatprep.subr.bf16.mxu0 0
        %1051 = vmatpush1.bf16.msra.mxu0 0
        %1052 = vmatprep.subr.bf16.mxu0 0
        %1053 = vmatpush1.bf16.msra.mxu0 0
        %1054 = vmatprep.subr.bf16.mxu0 0
        %1055 = vmatpush1.bf16.msra.mxu0 0
        %1056 = vmatprep.subr.bf16.mxu0 0
        %1057 = vmatpush1.bf16.msra.mxu0 0
        %1058 = vmatprep.subr.bf16.mxu0 0
        %1059 = vmatpush1.bf16.msra.mxu0 0
        %1060 = vmatprep.subr.bf16.mxu0 0
        %1061 = vmatpush1.bf16.msra.mxu0 0
        %1062 = vmatprep.subr.bf16.mxu0 0
        %1063 = vmatpush1.bf16.msra.mxu0 0
        %1064 = vmatprep.subr.bf16.mxu0 0
        %1065 = vmatpush1.bf16.msra.mxu0 0
        %1066 = vmatprep.subr.bf16.mxu0 0
        %1067 = vmatpush1.bf16.msra.mxu0 0
        %1068 = vmatprep.subr.bf16.mxu0 0
        %1069 = vmatpush1.bf16.msra.mxu0 0
        %1070 = vmatprep.subr.bf16.mxu0 0
        %1071 = vmatpush1.bf16.msra.mxu0 0
        %1072 = vmatprep.subr.bf16.mxu0 0
        %1073 = vmatpush1.bf16.msra.mxu0 0
        %1074 = vmatprep.subr.bf16.mxu0 0
        %1075 = vmatpush1.bf16.msra.mxu0 0
        %1076 = vmatprep.subr.bf16.mxu0 0
        %1077 = vmatpush1.bf16.msra.mxu0 0
        %1078 = vmatprep.subr.bf16.mxu0 0
        %1079 = vmatpush1.bf16.msra.mxu0 0
        %1080 = vmatprep.mubr.bf16.mxu0 0
        %1081 = vmatmul.mubr.bf16.gmra.mrb[0].mxu0 %v1043
        %v1082 = vpop.f32.mrb[0].mxu0
        %v1083 = vadd.f32 0.0, %v1082
        %v1084 = vpop.f32.mrb[0].mxu0
        %v1085 = vpop.f32.mrb[0].mxu0
        %v1086 = vadd.f32 0.0, %v1085
        %v1087 = vpop.f32.mrb[0].mxu0
        %1088 = vdwg.mxu0
        %v1089 = vadd.f32 %v1027, %v1083
        %v1090 = vadd.f32 %v1028, %v1086
        %v1091 = vld [vmem:[%s1032 + $0x4] sm:$0x7]
        %s1092 = scalar_lea.vmem %s3, 16
        %v1093 = vld [vmem:[%s1092] sm:$0xf]
        %v1095 = vunpack.c.l.b16 %v1091
        %v1096 = vpack.c.b16 %v1095, %v1039
        %v1098 = vshrl.u32 %v1096, 16
        %v1100 = vshll.u32 %v1096, 16
        %v1102 = vrot.slane %v1100, 1
        %v1103 = vor.u32 %v1098, %v1102
        %v1105 = vsel %vm874, %v1103, 0
        %v1108 = vsel %vm878, %v1093, 0
        %1110 = vmatprep.subr.bf16.mxu0 0
        %1111 = vmatpush1.bf16.msra.mxu0 %v1108
        %1112 = vmatprep.subr.bf16.mxu0 0
        %1113 = vmatpush1.bf16.msra.mxu0 0
        %1114 = vmatprep.subr.bf16.mxu0 0
        %1115 = vmatpush1.bf16.msra.mxu0 0
        %1116 = vmatprep.subr.bf16.mxu0 0
        %1117 = vmatpush1.bf16.msra.mxu0 0
        %1118 = vmatprep.subr.bf16.mxu0 0
        %1119 = vmatpush1.bf16.msra.mxu0 0
        %1120 = vmatprep.subr.bf16.mxu0 0
        %1121 = vmatpush1.bf16.msra.mxu0 0
        %1122 = vmatprep.subr.bf16.mxu0 0
        %1123 = vmatpush1.bf16.msra.mxu0 0
        %1124 = vmatprep.subr.bf16.mxu0 0
        %1125 = vmatpush1.bf16.msra.mxu0 0
        %1126 = vmatprep.subr.bf16.mxu0 0
        %1127 = vmatpush1.bf16.msra.mxu0 0
        %1128 = vmatprep.subr.bf16.mxu0 0
        %1129 = vmatpush1.bf16.msra.mxu0 0
        %1130 = vmatprep.subr.bf16.mxu0 0
        %1131 = vmatpush1.bf16.msra.mxu0 0
        %1132 = vmatprep.subr.bf16.mxu0 0
        %1133 = vmatpush1.bf16.msra.mxu0 0
        %1134 = vmatprep.subr.bf16.mxu0 0
        %1135 = vmatpush1.bf16.msra.mxu0 0
        %1136 = vmatprep.subr.bf16.mxu0 0
        %1137 = vmatpush1.bf16.msra.mxu0 0
        %1138 = vmatprep.subr.bf16.mxu0 0
        %1139 = vmatpush1.bf16.msra.mxu0 0
        %1140 = vmatprep.subr.bf16.mxu0 0
        %1141 = vmatpush1.bf16.msra.mxu0 0
        %1142 = vmatprep.mubr.bf16.mxu0 0
        %1143 = vmatmul.mubr.bf16.gmra.mrb[0].mxu0 %v1105
        %v1144 = vpop.f32.mrb[0].mxu0
        %v1145 = vadd.f32 0.0, %v1144
        %v1146 = vpop.f32.mrb[0].mxu0
        %v1147 = vpop.f32.mrb[0].mxu0
        %v1148 = vadd.f32 0.0, %v1147
        %v1149 = vpop.f32.mrb[0].mxu0
        %1150 = vdwg.mxu0
        %v1151 = vadd.f32 %v1089, %v1145
        %v1152 = vadd.f32 %v1090, %v1148
        %v1153 = vld [vmem:[%s1032] sm:$0xe]
        %s1154 = scalar_lea.vmem %s3, 20
        %v1155 = vld [vmem:[%s1154] sm:$0xf]
        %v1157 = vunpack.c.l.b16 %v1153
        %v1158 = vpack.c.b16 %v1095, %v1157
        %v1159 = vrot.slane %v1158, 1
        %v1161 = vsel %vm874, %v1159, 0
        %v1164 = vsel %vm878, %v1155, 0
        %1166 = vmatprep.subr.bf16.mxu0 0
        %1167 = vmatpush1.bf16.msra.mxu0 %v1164
        %1168 = vmatprep.subr.bf16.mxu0 0
        %1169 = vmatpush1.bf16.msra.mxu0 0
        %1170 = vmatprep.subr.bf16.mxu0 0
        %1171 = vmatpush1.bf16.msra.mxu0 0
        %1172 = vmatprep.subr.bf16.mxu0 0
        %1173 = vmatpush1.bf16.msra.mxu0 0
        %1174 = vmatprep.subr.bf16.mxu0 0
        %1175 = vmatpush1.bf16.msra.mxu0 0
        %1176 = vmatprep.subr.bf16.mxu0 0
        %1177 = vmatpush1.bf16.msra.mxu0 0
        %1178 = vmatprep.subr.bf16.mxu0 0
        %1179 = vmatpush1.bf16.msra.mxu0 0
        %1180 = vmatprep.subr.bf16.mxu0 0
        %1181 = vmatpush1.bf16.msra.mxu0 0
        %1182 = vmatprep.subr.bf16.mxu0 0
        %1183 = vmatpush1.bf16.msra.mxu0 0
        %1184 = vmatprep.subr.bf16.mxu0 0
        %1185 = vmatpush1.bf16.msra.mxu0 0
        %1186 = vmatprep.subr.bf16.mxu0 0
        %1187 = vmatpush1.bf16.msra.mxu0 0
        %1188 = vmatprep.subr.bf16.mxu0 0
        %1189 = vmatpush1.bf16.msra.mxu0 0
        %1190 = vmatprep.subr.bf16.mxu0 0
        %1191 = vmatpush1.bf16.msra.mxu0 0
        %1192 = vmatprep.subr.bf16.mxu0 0
        %1193 = vmatpush1.bf16.msra.mxu0 0
        %1194 = vmatprep.subr.bf16.mxu0 0
        %1195 = vmatpush1.bf16.msra.mxu0 0
        %1196 = vmatprep.subr.bf16.mxu0 0
        %1197 = vmatpush1.bf16.msra.mxu0 0
        %1198 = vmatprep.mubr.bf16.mxu0 0
        %1199 = vmatmul.mubr.bf16.gmra.mrb[0].mxu0 %v1161
        %v1200 = vpop.f32.mrb[0].mxu0
        %v1201 = vadd.f32 0.0, %v1200
        %v1202 = vpop.f32.mrb[0].mxu0
        %v1203 = vpop.f32.mrb[0].mxu0
        %v1204 = vadd.f32 0.0, %v1203
        %v1205 = vpop.f32.mrb[0].mxu0
        %1206 = vdwg.mxu0
        %v1207 = vadd.f32 %v1151, %v1201
        %v1208 = vadd.f32 %v1152, %v1204
        %s1209 = sadd.s32 %s848, 2
        %s1210 = smul.u32 %s1209, 2
        %s1211 = smul.addr %s1210, 4
        %s1212 = scalar_lea.vmem [#allocation2], %s1211
        %v1213 = vld [vmem:[%s1212] sm:$0xf]
        %v1214 = vld [vmem:[%s1212 + $0x4] sm:$0x3]
        %s1215 = scalar_lea.vmem %s3, 24
        %v1216 = vld [vmem:[%s1215] sm:$0xf]
        %v1219 = vunpack.c.l.b16 %v1213
        %v1220 = vunpack.c.l.b16 %v1214
        %v1221 = vpack.c.b16 %v1220, %v1219
        %v1223 = vsel %vm874, %v1221, 0
        %v1226 = vsel %vm878, %v1216, 0
        %1228 = vmatprep.subr.bf16.mxu0 0
        %1229 = vmatpush1.bf16.msra.mxu0 %v1226
        %1230 = vmatprep.subr.bf16.mxu0 0
        %1231 = vmatpush1.bf16.msra.mxu0 0
        %1232 = vmatprep.subr.bf16.mxu0 0
        %1233 = vmatpush1.bf16.msra.mxu0 0
        %1234 = vmatprep.subr.bf16.mxu0 0
        %1235 = vmatpush1.bf16.msra.mxu0 0
        %1236 = vmatprep.subr.bf16.mxu0 0
        %1237 = vmatpush1.bf16.msra.mxu0 0
        %1238 = vmatprep.subr.bf16.mxu0 0
        %1239 = vmatpush1.bf16.msra.mxu0 0
        %1240 = vmatprep.subr.bf16.mxu0 0
        %1241 = vmatpush1.bf16.msra.mxu0 0
        %1242 = vmatprep.subr.bf16.mxu0 0
        %1243 = vmatpush1.bf16.msra.mxu0 0
        %1244 = vmatprep.subr.bf16.mxu0 0
        %1245 = vmatpush1.bf16.msra.mxu0 0
        %1246 = vmatprep.subr.bf16.mxu0 0
        %1247 = vmatpush1.bf16.msra.mxu0 0
        %1248 = vmatprep.subr.bf16.mxu0 0
        %1249 = vmatpush1.bf16.msra.mxu0 0
        %1250 = vmatprep.subr.bf16.mxu0 0
        %1251 = vmatpush1.bf16.msra.mxu0 0
        %1252 = vmatprep.subr.bf16.mxu0 0
        %1253 = vmatpush1.bf16.msra.mxu0 0
        %1254 = vmatprep.subr.bf16.mxu0 0
        %1255 = vmatpush1.bf16.msra.mxu0 0
        %1256 = vmatprep.subr.bf16.mxu0 0
        %1257 = vmatpush1.bf16.msra.mxu0 0
        %1258 = vmatprep.subr.bf16.mxu0 0
        %1259 = vmatpush1.bf16.msra.mxu0 0
        %1260 = vmatprep.mubr.bf16.mxu0 0
        %1261 = vmatmul.mubr.bf16.gmra.mrb[0].mxu0 %v1223
        %v1262 = vpop.f32.mrb[0].mxu0
        %v1263 = vadd.f32 0.0, %v1262
        %v1264 = vpop.f32.mrb[0].mxu0
        %v1265 = vpop.f32.mrb[0].mxu0
        %v1266 = vadd.f32 0.0, %v1265
        %v1267 = vpop.f32.mrb[0].mxu0
        %1268 = vdwg.mxu0
        %v1269 = vadd.f32 %v1207, %v1263
        %v1270 = vadd.f32 %v1208, %v1266
        %v1271 = vld [vmem:[%s1212 + $0x4] sm:$0x7]
        %s1272 = scalar_lea.vmem %s3, 28
        %v1273 = vld [vmem:[%s1272] sm:$0xf]
        %v1275 = vunpack.c.l.b16 %v1271
        %v1276 = vpack.c.b16 %v1275, %v1219
        %v1278 = vshrl.u32 %v1276, 16
        %v1280 = vshll.u32 %v1276, 16
        %v1282 = vrot.slane %v1280, 1
        %v1283 = vor.u32 %v1278, %v1282
        %v1285 = vsel %vm874, %v1283, 0
        %v1288 = vsel %vm878, %v1273, 0
        %1290 = vmatprep.subr.bf16.mxu0 0
        %1291 = vmatpush1.bf16.msra.mxu0 %v1288
        %1292 = vmatprep.subr.bf16.mxu0 0
        %1293 = vmatpush1.bf16.msra.mxu0 0
        %1294 = vmatprep.subr.bf16.mxu0 0
        %1295 = vmatpush1.bf16.msra.mxu0 0
        %1296 = vmatprep.subr.bf16.mxu0 0
        %1297 = vmatpush1.bf16.msra.mxu0 0
        %1298 = vmatprep.subr.bf16.mxu0 0
        %1299 = vmatpush1.bf16.msra.mxu0 0
        %1300 = vmatprep.subr.bf16.mxu0 0
        %1301 = vmatpush1.bf16.msra.mxu0 0
        %1302 = vmatprep.subr.bf16.mxu0 0
        %1303 = vmatpush1.bf16.msra.mxu0 0
        %1304 = vmatprep.subr.bf16.mxu0 0
        %1305 = vmatpush1.bf16.msra.mxu0 0
        %1306 = vmatprep.subr.bf16.mxu0 0
        %1307 = vmatpush1.bf16.msra.mxu0 0
        %1308 = vmatprep.subr.bf16.mxu0 0
        %1309 = vmatpush1.bf16.msra.mxu0 0
        %1310 = vmatprep.subr.bf16.mxu0 0
        %1311 = vmatpush1.bf16.msra.mxu0 0
        %1312 = vmatprep.subr.bf16.mxu0 0
        %1313 = vmatpush1.bf16.msra.mxu0 0
        %1314 = vmatprep.subr.bf16.mxu0 0
        %1315 = vmatpush1.bf16.msra.mxu0 0
        %1316 = vmatprep.subr.bf16.mxu0 0
        %1317 = vmatpush1.bf16.msra.mxu0 0
        %1318 = vmatprep.subr.bf16.mxu0 0
        %1319 = vmatpush1.bf16.msra.mxu0 0
        %1320 = vmatprep.subr.bf16.mxu0 0
        %1321 = vmatpush1.bf16.msra.mxu0 0
        %1322 = vmatprep.mubr.bf16.mxu0 0
        %1323 = vmatmul.mubr.bf16.gmra.mrb[0].mxu0 %v1285
        %v1324 = vpop.f32.mrb[0].mxu0
        %v1325 = vadd.f32 0.0, %v1324
        %v1326 = vpop.f32.mrb[0].mxu0
        %v1327 = vpop.f32.mrb[0].mxu0
        %v1328 = vadd.f32 0.0, %v1327
        %v1329 = vpop.f32.mrb[0].mxu0
        %1330 = vdwg.mxu0
        %v1331 = vadd.f32 %v1269, %v1325
        %v1332 = vadd.f32 %v1270, %v1328
        %v1333 = vld [vmem:[%s1212] sm:$0xe]
        %s1334 = scalar_lea.vmem %s3, 32
        %v1335 = vld [vmem:[%s1334] sm:$0xf]
        %v1337 = vunpack.c.l.b16 %v1333
        %v1338 = vpack.c.b16 %v1275, %v1337
        %v1339 = vrot.slane %v1338, 1
        %v1341 = vsel %vm874, %v1339, 0
        %v1344 = vsel %vm878, %v1335, 0
        %1346 = vmatprep.subr.bf16.mxu0 0
        %1347 = vmatpush1.bf16.msra.mxu0 %v1344
        %1348 = vmatprep.subr.bf16.mxu0 0
        %1349 = vmatpush1.bf16.msra.mxu0 0
        %1350 = vmatprep.subr.bf16.mxu0 0
        %1351 = vmatpush1.bf16.msra.mxu0 0
        %1352 = vmatprep.subr.bf16.mxu0 0
        %1353 = vmatpush1.bf16.msra.mxu0 0
        %1354 = vmatprep.subr.bf16.mxu0 0
        %1355 = vmatpush1.bf16.msra.mxu0 0
        %1356 = vmatprep.subr.bf16.mxu0 0
        %1357 = vmatpush1.bf16.msra.mxu0 0
        %1358 = vmatprep.subr.bf16.mxu0 0
        %1359 = vmatpush1.bf16.msra.mxu0 0
        %1360 = vmatprep.subr.bf16.mxu0 0
        %1361 = vmatpush1.bf16.msra.mxu0 0
        %1362 = vmatprep.subr.bf16.mxu0 0
        %1363 = vmatpush1.bf16.msra.mxu0 0
        %1364 = vmatprep.subr.bf16.mxu0 0
        %1365 = vmatpush1.bf16.msra.mxu0 0
        %1366 = vmatprep.subr.bf16.mxu0 0
        %1367 = vmatpush1.bf16.msra.mxu0 0
        %1368 = vmatprep.subr.bf16.mxu0 0
        %1369 = vmatpush1.bf16.msra.mxu0 0
        %1370 = vmatprep.subr.bf16.mxu0 0
        %1371 = vmatpush1.bf16.msra.mxu0 0
        %1372 = vmatprep.subr.bf16.mxu0 0
        %1373 = vmatpush1.bf16.msra.mxu0 0
        %1374 = vmatprep.subr.bf16.mxu0 0
        %1375 = vmatpush1.bf16.msra.mxu0 0
        %1376 = vmatprep.subr.bf16.mxu0 0
        %1377 = vmatpush1.bf16.msra.mxu0 0
        %1378 = vmatprep.mubr.bf16.mxu0 0
        %1379 = vmatmul.mubr.bf16.gmra.mrb[0].mxu0 %v1341
        %v1380 = vpop.f32.mrb[0].mxu0
        %v1381 = vadd.f32 0.0, %v1380
        %v1382 = vpop.f32.mrb[0].mxu0
        %v1383 = vpop.f32.mrb[0].mxu0
        %v1384 = vadd.f32 0.0, %v1383
        %v1385 = vpop.f32.mrb[0].mxu0
        %1386 = vdwg.mxu0
        %v1387 = vadd.f32 %v1331, %v1381
        %v1388 = vadd.f32 %v1332, %v1384
        %v1389 = vld [vmem:[%s4] sm:$0x1]
        %v1391 = vlaneseq
        %v1392 = vshrl.u32 %v1391, 7
        %v1393 = vsub.s32 0, %v1392
        %v1394 = vrot.slane %v1389, %v1393
        %v1396 = vadd.f32 %v1387, %v1394
        %v1397 = vadd.f32 %v1388, %v1394
        %v1398 = vmax.f32 %v1396, 0.0
        %v1399 = vmax.f32 %v1397, 0.0
        %v1400 = vpack.c.bf16 %v1399, %v1398
        %v1401 = vld [vmem:[%s5] sm:$0xf]
        %v1402 = vld [vmem:[%s6] sm:$0x1]
        %v1404 = vlaneseq
        %v1405 = vshrl.u32 %v1404, 7
        %v1406 = vsub.s32 0, %v1405
        %v1407 = vrot.slane %v1402, %v1406
        %v1410 = vsel %vm874, %v1400, 0
        %v1413 = vsel %vm878, %v1401, 0
        %1415 = vmatprep.subr.bf16.mxu0 0
        %1416 = vmatpush1.bf16.msra.mxu0 %v1413
        %1417 = vmatprep.subr.bf16.mxu0 0
        %1418 = vmatpush1.bf16.msra.mxu0 0
        %1419 = vmatprep.subr.bf16.mxu0 0
        %1420 = vmatpush1.bf16.msra.mxu0 0
        %1421 = vmatprep.subr.bf16.mxu0 0
        %1422 = vmatpush1.bf16.msra.mxu0 0
        %1423 = vmatprep.subr.bf16.mxu0 0
        %1424 = vmatpush1.bf16.msra.mxu0 0
        %1425 = vmatprep.subr.bf16.mxu0 0
        %1426 = vmatpush1.bf16.msra.mxu0 0
        %1427 = vmatprep.subr.bf16.mxu0 0
        %1428 = vmatpush1.bf16.msra.mxu0 0
        %1429 = vmatprep.subr.bf16.mxu0 0
        %1430 = vmatpush1.bf16.msra.mxu0 0
        %1431 = vmatprep.subr.bf16.mxu0 0
        %1432 = vmatpush1.bf16.msra.mxu0 0
        %1433 = vmatprep.subr.bf16.mxu0 0
        %1434 = vmatpush1.bf16.msra.mxu0 0
        %1435 = vmatprep.subr.bf16.mxu0 0
        %1436 = vmatpush1.bf16.msra.mxu0 0
        %1437 = vmatprep.subr.bf16.mxu0 0
        %1438 = vmatpush1.bf16.msra.mxu0 0
        %1439 = vmatprep.subr.bf16.mxu0 0
        %1440 = vmatpush1.bf16.msra.mxu0 0
        %1441 = vmatprep.subr.bf16.mxu0 0
        %1442 = vmatpush1.bf16.msra.mxu0 0
        %1443 = vmatprep.subr.bf16.mxu0 0
        %1444 = vmatpush1.bf16.msra.mxu0 0
        %1445 = vmatprep.subr.bf16.mxu0 0
        %1446 = vmatpush1.bf16.msra.mxu0 0
        %1447 = vmatprep.mubr.bf16.mxu0 0
        %1448 = vmatmul.mubr.bf16.gmra.mrb[0].mxu0 %v1410
        %v1449 = vpop.f32.mrb[0].mxu0
        %v1450 = vadd.f32 %v1407, %v1449
        %v1451 = vpop.f32.mrb[0].mxu0
        %v1452 = vpop.f32.mrb[0].mxu0
        %v1453 = vadd.f32 %v1407, %v1452
        %v1454 = vpop.f32.mrb[0].mxu0
        %1455 = vdwg.mxu0
        %s1456 = smul.u32 %s848, 32
        %s1457 = scalar_lea.vmem %s278, %s1456
        %1458 = vst.msk [vmem:[%s1457] sm:$0xff] %vm874, %v1450
        %vm1459 = vcmask 60416
        %1460 = vst.msk [vmem:[%s1457 + $0x8] sm:$0xf] %vm1459, %v1453
        %1463 = vrot.lane.b32.xlu0 %v1450, 120
        %v1464 = vpop.permute.xlu0 %1463
        %1465 = vrot.lane.b32.xlu0 %v1453, 120
        %v1466 = vpop.permute.xlu0 %1465
        %s1469 = sadd.s32 16, %s1456
        %s1470 = scalar_lea.vmem %s278, %s1469
        %1471 = vst.msk [vmem:[%s1470] sm:$0xff] %vm874, %v1464
        %1472 = vst.msk [vmem:[%s1470 + $0x8] sm:$0xf] %vm1459, %v1466
      $region60: #{_forward.1} parent=47 // loop_footer
        %s852 = sadd.s32 1, %s848
      $region61: #{_forward.1} parent=47 // loop_footer_branch
        %847 = sbr.rel target = $region57
      $region62: #{_forward.1} parent=47 // loop_exit
        _
      %p1473 = scmp.lt.s32.totalorder %s18, 1
      %s1474 = scalar_select %p1473, %s18, 1
      %s1475 = smul.addr %s1474, 48
      %s1476 = smul.addr %s1475, 8
      %s1477 = scalar_lea.vmem %s7, %s1476
      // Predicated region
      $region63: #{_forward.1} parent=47 // pred_check
        %p1478 = pneg %p188
      $region64: #{_forward.1} parent=47 // pred_check_branch
        %1480 = sbr.rel (%p1478) target = $region66
      $region65: #{_forward.1} parent=47 // pred_region
        _
      $region66: #{_forward.1} parent=47 // pred_fallthru
        _
    $region48: #{_forward.1} parent=5 // pred_fallthru
      _
    %p1481 = scmp.le.s32.totalorder 2, %s13
    // Predicated region
    $region67: #{_forward.1} parent=5 // pred_check
      %p1482 = pneg %p1481
    $region68: #{_forward.1} parent=5 // pred_check_branch
      %1484 = sbr.rel (%p1482) target = $region70
    $region69: #{_forward.1} parent=5 // pred_region
      %s1485 = ssub.s32 %s13, 2
      // Predicated region
      $region71: #{_forward.1} parent=69 // pred_check
        %p1486 = pneg %p194
      $region72: #{_forward.1} parent=69 // pred_check_branch
        %1488 = sbr.rel (%p1486) target = $region74
      $region73: #{_forward.1} parent=69 // pred_region
        %p1489 = scmp.lt.s32.totalorder %s19, 1
        %s1490 = scalar_select %p1489, %s19, 1
        %s1491 = smul.addr %s1490, 48
        %s1492 = smul.addr %s1491, 8
        %s1493 = scalar_lea.vmem %s7, %s1492
      $region74: #{_forward.1} parent=69 // pred_fallthru
        _
    $region70: #{_forward.1} parent=5 // pred_fallthru
      _
  $region6: #{_forward.1} parent=0 // loop_footer
    %s17 = sadd.s32 1, %s13
  $region7: #{_forward.1} parent=0 // loop_footer_branch
    %12 = sbr.rel target = $region3
  $region8: #{_forward.1} parent=0 // loop_exit
    _

</llo_original>
